<compile_context>
chip_gen: v7x
topology: tpu7x:2x2x1
jax: 0.10.0
libtpu: 0.0.40
codegen_flags: <defaults>
</compile_context>

<pallas_src>
import functools

import jax
import jax.numpy as jnp
import numpy as np
from jax.experimental import pallas as pl
from jax.experimental.pallas import tpu as pltpu


def _layernorm(v, gamma, beta, eps=1e-5):
    mu = jnp.mean(v, axis=-1, keepdims=True)
    var = jnp.mean((v - mu) ** 2, axis=-1, keepdims=True)
    return (v - mu) * jax.lax.rsqrt(var + eps) * gamma + beta


def transformer_block_kernel(x_full_ref, xq_ref,
                             wq_ref, wk_ref, wv_ref, wp_ref, bp_ref,
                             w1_ref, b1_ref, w2_ref, b2_ref,
                             g1_ref, be1_ref, g2_ref, be2_ref,
                             o_ref, khT_s, vh_s,
                             *, num_heads, head_size, q_tile):
    H, hs, tq = num_heads, head_size, q_tile
    T, C = x_full_ref.shape[1], x_full_ref.shape[2]
    f32, bf16 = jnp.float32, jnp.bfloat16

    t = pl.program_id(1)
    g1, be1 = g1_ref[...], be1_ref[...]

    # ---- Once per batch row: full-seq LN1 + K/V projections + head split into scratch.
    # Scratch persists across grid steps; with the t axis "arbitrary" every batch row
    # starts at t == 0 on one core, so K/V are computed once and reused by every q-tile.
    # K is stored pre-transposed (H, hs, T) so per-tile score matmuls need no transpose.
    @pl.when(t == 0)
    def _cache_kv():
        x_full = x_full_ref[0]                                          # (T, C) f32
        xn1 = _layernorm(x_full, g1, be1).astype(bf16)                  # (T, C) bf16
        k = jnp.dot(xn1, wk_ref[...], preferred_element_type=f32)       # (T, C) f32
        v = jnp.dot(xn1, wv_ref[...], preferred_element_type=f32)       # (T, C) f32
        for h in range(H):                                              # amortized: once per batch row
            sl = slice(h * hs, (h + 1) * hs)
            khT_s[h] = k[:, sl].T.astype(bf16)                          # (hs, T)
            vh_s[h] = v[:, sl].astype(bf16)                             # (T, hs)

    # ---- Per q-tile: Q projection + causal attention + output projection + FFN. ----
    xq = xq_ref[0]                                                      # (tq, C) raw rows (residual)
    xn1_q = _layernorm(xq, g1, be1).astype(bf16)
    q = jnp.dot(xn1_q, wq_ref[...], preferred_element_type=f32)         # (tq, C) f32
    qh = jnp.stack([q[:, h * hs:(h + 1) * hs] for h in range(H)],
                   axis=0).astype(bf16)                                 # (H, tq, hs) bf16

    # NOTE: the PyTorch source scales by C**-0.5 (full embedding dim), not head_size**-0.5.
    scale = C ** (-0.5)
    s = jnp.einsum('hqd,hdk->hqk', qh, khT_s[...],
                   preferred_element_type=f32) * scale                  # (H, tq, T) f32
    q_start = t * tq
    q_idx = q_start + jax.lax.broadcasted_iota(jnp.int32, (1, tq, T), 1)
    k_idx = jax.lax.broadcasted_iota(jnp.int32, (1, tq, T), 2)
    s = jnp.where(q_idx >= k_idx, s, -1e30)                             # NaN-safe causal mask
    m = jnp.max(s, axis=-1, keepdims=True)
    p = jnp.exp(s - m)
    l = jnp.sum(p, axis=-1, keepdims=True)
    o_h = jnp.einsum('hqk,hkd->hqd', p.astype(bf16), vh_s[...],
                     preferred_element_type=f32)                        # (H, tq, hs) f32
    # Approximate reciprocal runs on the EUP slot; error ~1e-3 rel, fine at bf16 tolerance.
    o_h = o_h * pl.reciprocal(l, approx=True)

    attn = jnp.concatenate([o_h[h] for h in range(H)], axis=-1)         # (tq, C) f32
    attn = jnp.dot(attn.astype(bf16), wp_ref[...],
                   preferred_element_type=f32) + bp_ref[...]
    x1 = xq + attn                                                      # residual 1 (f32)

    xn2 = _layernorm(x1, g2_ref[...], be2_ref[...]).astype(bf16)
    hdn = jnp.dot(xn2, w1_ref[...], preferred_element_type=f32) + b1_ref[...]
    hdn = jnp.maximum(hdn, 0.0).astype(bf16)                            # ReLU
    ffn = jnp.dot(hdn, w2_ref[...], preferred_element_type=f32) + b2_ref[...]
    # Dropout is identity in eval mode.
    o_ref[0] = (x1 + ffn).astype(o_ref.dtype)                           # residual 2, lane-dense store


def _vmem_limit_bytes(T, C, tq, E, H, hs):
    """Rough resident-VMEM estimate with headroom; clamped to 64 MiB (safe on v7x)."""
    bf, f4 = 2, 4
    weights = (4 * C * C + 2 * C * E) * bf * 2          # bf16 weights, double-buffered
    smalls = (7 * C + E) * f4 * 2                       # biases + LN params
    io = (T * C + 2 * tq * C) * f4 * 2                  # x_full + x_tile + out tile
    scratch = 2 * H * T * hs * bf                       # cached K^T / V heads
    temps = (2 * H * tq * T + tq * E + 6 * tq * C + 2 * T * C) * f4
    est = weights + smalls + io + scratch + temps
    return int(min(max(2 * est, 32 << 20), 64 << 20))


def prepare_params(params):
    """One-time preparation: cast matmul weights to bf16 (MXU-native).

    Call this ONCE when the params are created — not per forward call — so the f32->bf16
    convert (and its HBM traffic) is not re-emitted on every invocation."""
    bf16 = jnp.bfloat16
    p = dict(params)
    for k in ("wq", "wk", "wv", "wp", "w1", "w2"):
        p[k] = params[k].astype(bf16)
    return p


def transformer_block(x, params, num_heads, q_tile=None):
    B, T, C = x.shape
    head_size = C // num_heads
    E = 4 * C
    if q_tile is None:
        # 256 fills the 256-wide MXU on v6e/v7x; prefer 128 on v5e (128x128 MXU).
        q_tile = T if T <= 256 else 256
    assert T % q_tile == 0
    # Multiples of 16 preferred for bf16 sublane packing; 8 is the hard floor.
    assert q_tile == T or q_tile % 8 == 0
    n_qt = T // q_tile

    bf16 = jnp.bfloat16
    # Weights should already be bf16 (see prepare_params); fall back to a cast if not.
    w = {k: (params[k] if params[k].dtype == bf16 else params[k].astype(bf16))
         for k in ("wq", "wk", "wv", "wp", "w1", "w2")}

    full = lambda shape: pl.BlockSpec(shape, lambda b, t: tuple(0 for _ in shape))
    kernel = functools.partial(transformer_block_kernel, num_heads=num_heads,
                               head_size=head_size, q_tile=q_tile)

    return pl.pallas_call(
        kernel,
        out_shape=jax.ShapeDtypeStruct((B, T, C), x.dtype),
        grid_spec=pltpu.PrefetchScalarGridSpec(
            num_scalar_prefetch=0,
            grid=(B, n_qt),
            in_specs=[
                pl.BlockSpec((1, T, C), lambda b, t: (b, 0, 0)),        # x full seq (K/V at t==0)
                pl.BlockSpec((1, q_tile, C), lambda b, t: (b, t, 0)),   # x q-tile rows (Q + residual)
                full((C, C)), full((C, C)), full((C, C)),               # Wq, Wk, Wv (bf16)
                full((C, C)), full((1, C)),                             # Wproj (bf16), bproj
                full((C, E)), full((1, E)),                             # W1 (bf16), b1
                full((E, C)), full((1, C)),                             # W2 (bf16), b2
                full((1, C)), full((1, C)),                             # ln1 gamma, beta
                full((1, C)), full((1, C)),                             # ln2 gamma, beta
            ],
            out_specs=pl.BlockSpec((1, q_tile, C), lambda b, t: (b, t, 0)),
            scratch_shapes=[
                pltpu.VMEM((num_heads, head_size, T), bf16),            # K^T heads (cached per batch row)
                pltpu.VMEM((num_heads, T, head_size), bf16),            # V heads   (cached per batch row)
            ],
        ),
        compiler_params=pltpu.CompilerParams(
            # t axis MUST be "arbitrary": the K/V cache is filled at t==0 and reused.
            dimension_semantics=("parallel", "arbitrary"),
            vmem_limit_bytes=_vmem_limit_bytes(T, C, q_tile, E, num_heads, head_size)),
    )(x, x, w["wq"], w["wk"], w["wv"], w["wp"], params["bp"],
      w["w1"], params["b1"], w["w2"], params["b2"],
      params["g1"], params["be1"], params["g2"], params["be2"])


def reference(x, params, num_heads):
    """Plain-JAX f32 reference implementing the same math for verification."""
    B, T, C = x.shape
    hs = C // num_heads
    xn1 = _layernorm(x, params["g1"], params["be1"])
    q = xn1 @ params["wq"]
    k = xn1 @ params["wk"]
    v = xn1 @ params["wv"]
    causal = np.tril(np.ones((T, T), dtype=bool))
    outs = []
    for h in range(num_heads):
        sl = slice(h * hs, (h + 1) * hs)
        s = (q[..., sl] @ jnp.swapaxes(k[..., sl], -1, -2)) * (C ** -0.5)
        s = jnp.where(causal, s, -jnp.inf)
        p = jax.nn.softmax(s, axis=-1)
        outs.append(p @ v[..., sl])
    attn = jnp.concatenate(outs, axis=-1) @ params["wp"] + params["bp"]
    x1 = x + attn
    xn2 = _layernorm(x1, params["g2"], params["be2"])
    ffn = jnp.maximum(xn2 @ params["w1"] + params["b1"], 0.0) @ params["w2"] + params["b2"]
    return x1 + ffn


def init_params(key, C, expansion=4):
    E = expansion * C
    ks = jax.random.split(key, 8)
    s = 0.02
    return {
        "wq": jax.random.normal(ks[0], (C, C), jnp.float32) * s,
        "wk": jax.random.normal(ks[1], (C, C), jnp.float32) * s,
        "wv": jax.random.normal(ks[2], (C, C), jnp.float32) * s,
        "wp": jax.random.normal(ks[3], (C, C), jnp.float32) * s,
        "bp": jax.random.normal(ks[4], (1, C), jnp.float32) * s,
        "w1": jax.random.normal(ks[5], (C, E), jnp.float32) * s,
        "b1": jax.random.normal(ks[6], (1, E), jnp.float32) * s,
        "w2": jax.random.normal(ks[7], (E, C), jnp.float32) * s,
        "b2": jnp.zeros((1, C), jnp.float32),
        "g1": jnp.ones((1, C), jnp.float32),
        "be1": jnp.zeros((1, C), jnp.float32),
        "g2": jnp.ones((1, C), jnp.float32),
        "be2": jnp.zeros((1, C), jnp.float32),
    }


if __name__ == "__main__":
    # Small shapes consistent with the module; q_tile=8 gives two q-tiles per batch row
    # so the cached-K/V path (t > 0 reuse) is actually exercised.
    B, T, C, num_heads = 2, 16, 32, 4   # block_size == T
    q_tile = 8
    key = jax.random.PRNGKey(0)
    kx, kp = jax.random.split(key)
    x = jax.random.normal(kx, (B, T, C), jnp.float32)
    params = init_params(kp, C)
    prepared = prepare_params(params)   # one-time bf16 weight cast (not per call)

    out = jax.block_until_ready(transformer_block(x, prepared, num_heads, q_tile=q_tile))

    ref = reference(x, params, num_heads)
    # bf16 MXU inputs with f32 accumulation + approx reciprocal -> bf16-level tolerance.
    np.testing.assert_allclose(np.asarray(out), np.asarray(ref), atol=2e-2, rtol=2e-2)
    print("KERNEL_OK")
</pallas_src>

<mosaic_0001>
module attributes {stable_mosaic.version = 11 : i64} {
  func.func @transformer_block_kernel(%arg0: i32, %arg1: i32, %arg2: memref<1x16x32xf32, #tpu.memory_space<vmem>>, %arg3: memref<1x8x32xf32, #tpu.memory_space<vmem>>, %arg4: memref<32x32xbf16, #tpu.memory_space<vmem>>, %arg5: memref<32x32xbf16, #tpu.memory_space<vmem>>, %arg6: memref<32x32xbf16, #tpu.memory_space<vmem>>, %arg7: memref<32x32xbf16, #tpu.memory_space<vmem>>, %arg8: memref<1x32xf32, #tpu.memory_space<vmem>>, %arg9: memref<32x128xbf16, #tpu.memory_space<vmem>>, %arg10: memref<1x128xf32, #tpu.memory_space<vmem>>, %arg11: memref<128x32xbf16, #tpu.memory_space<vmem>>, %arg12: memref<1x32xf32, #tpu.memory_space<vmem>>, %arg13: memref<1x32xf32, #tpu.memory_space<vmem>>, %arg14: memref<1x32xf32, #tpu.memory_space<vmem>>, %arg15: memref<1x32xf32, #tpu.memory_space<vmem>>, %arg16: memref<1x32xf32, #tpu.memory_space<vmem>>, %arg17: memref<1x8x32xf32, #tpu.memory_space<vmem>>, %arg18: memref<4x8x16xbf16, #tpu.memory_space<vmem>>, %arg19: memref<4x16x8xbf16, #tpu.memory_space<vmem>>) attributes {dimension_semantics = [#tpu.dimension_semantics<parallel>, #tpu.dimension_semantics<arbitrary>], iteration_bounds = array<i64: 2, 2>, scalar_prefetch = 0 : i64, scratch_operands = 2 : i64, tpu.core_type = #tpu.core_type<tc>, window_params = [{transform_indices = @transform_0, window_bounds = array<i64: 1, 16, 32>}, {transform_indices = @transform_1, window_bounds = array<i64: 1, 8, 32>}, {pipeline_mode = #tpu.pipeline_mode<synchronous>, transform_indices = @transform_2, window_bounds = array<i64: 32, 32>}, {pipeline_mode = #tpu.pipeline_mode<synchronous>, transform_indices = @transform_3, window_bounds = array<i64: 32, 32>}, {pipeline_mode = #tpu.pipeline_mode<synchronous>, transform_indices = @transform_4, window_bounds = array<i64: 32, 32>}, {pipeline_mode = #tpu.pipeline_mode<synchronous>, transform_indices = @transform_5, window_bounds = array<i64: 32, 32>}, {pipeline_mode = #tpu.pipeline_mode<synchronous>, transform_indices = @transform_6, window_bounds = array<i64: 1, 32>}, {pipeline_mode = #tpu.pipeline_mode<synchronous>, transform_indices = @transform_7, window_bounds = array<i64: 32, 128>}, {pipeline_mode = #tpu.pipeline_mode<synchronous>, transform_indices = @transform_8, window_bounds = array<i64: 1, 128>}, {pipeline_mode = #tpu.pipeline_mode<synchronous>, transform_indices = @transform_9, window_bounds = array<i64: 128, 32>}, {pipeline_mode = #tpu.pipeline_mode<synchronous>, transform_indices = @transform_10, window_bounds = array<i64: 1, 32>}, {pipeline_mode = #tpu.pipeline_mode<synchronous>, transform_indices = @transform_11, window_bounds = array<i64: 1, 32>}, {pipeline_mode = #tpu.pipeline_mode<synchronous>, transform_indices = @transform_12, window_bounds = array<i64: 1, 32>}, {pipeline_mode = #tpu.pipeline_mode<synchronous>, transform_indices = @transform_13, window_bounds = array<i64: 1, 32>}, {pipeline_mode = #tpu.pipeline_mode<synchronous>, transform_indices = @transform_14, window_bounds = array<i64: 1, 32>}, {transform_indices = @transform_15, window_bounds = array<i64: 1, 8, 32>}]} {
    %c0 = arith.constant 0 : index
    %c0_0 = arith.constant 0 : index
    %0 = vector.load %arg13[%c0, %c0_0] : memref<1x32xf32, #tpu.memory_space<vmem>>, vector<1x32xf32>
    %c0_1 = arith.constant 0 : index
    %c0_2 = arith.constant 0 : index
    %1 = vector.load %arg14[%c0_1, %c0_2] : memref<1x32xf32, #tpu.memory_space<vmem>>, vector<1x32xf32>
    %c0_i32 = arith.constant 0 : i32
    %2 = arith.cmpi eq, %arg1, %c0_i32 : i32
    %3 = arith.extui %2 : i1 to i32
    %c0_i32_3 = arith.constant 0 : i32
    %4 = arith.cmpi ne, %3, %c0_i32_3 : i32
    scf.if %4 {
      %c0_54 = arith.constant 0 : index
      %c0_55 = arith.constant 0 : index
      %c0_56 = arith.constant 0 : index
      %127 = vector.load %arg2[%c0_54, %c0_55, %c0_56] : memref<1x16x32xf32, #tpu.memory_space<vmem>>, vector<1x16x32xf32>
      %128 = vector.shape_cast %127 : vector<1x16x32xf32> to vector<16x32xf32>
      %cst_57 = arith.constant dense<0.000000e+00> : vector<16xf32>
      %129 = vector.multi_reduction <add>, %128, %cst_57 [1] : vector<16x32xf32> to vector<16xf32>
      %130 = vector.shape_cast %129 : vector<16xf32> to vector<16x1xf32>
      %cst_58 = arith.constant 3.200000e+01 : f32
      %131 = vector.broadcast %cst_58 : f32 to vector<16x1xf32>
      %132 = arith.divf %130, %131 : vector<16x1xf32>
      %133 = vector.broadcast %132 : vector<16x1xf32> to vector<16x32xf32>
      %134 = arith.subf %128, %133 : vector<16x32xf32>
      %135 = arith.mulf %134, %134 : vector<16x32xf32>
      %cst_59 = arith.constant dense<0.000000e+00> : vector<16xf32>
      %136 = vector.multi_reduction <add>, %135, %cst_59 [1] : vector<16x32xf32> to vector<16xf32>
      %137 = vector.shape_cast %136 : vector<16xf32> to vector<16x1xf32>
      %cst_60 = arith.constant 3.200000e+01 : f32
      %138 = vector.broadcast %cst_60 : f32 to vector<16x1xf32>
      %139 = arith.divf %137, %138 : vector<16x1xf32>
      %140 = vector.broadcast %132 : vector<16x1xf32> to vector<16x32xf32>
      %141 = arith.subf %128, %140 : vector<16x32xf32>
      %cst_61 = arith.constant 9.99999974E-6 : f32
      %142 = vector.broadcast %cst_61 : f32 to vector<16x1xf32>
      %143 = arith.addf %139, %142 : vector<16x1xf32>
      %144 = math.rsqrt %143 : vector<16x1xf32>
      %145 = vector.broadcast %144 : vector<16x1xf32> to vector<16x32xf32>
      %146 = arith.mulf %141, %145 : vector<16x32xf32>
      %147 = vector.broadcast %0 : vector<1x32xf32> to vector<16x32xf32>
      %148 = arith.mulf %146, %147 : vector<16x32xf32>
      %149 = vector.broadcast %1 : vector<1x32xf32> to vector<16x32xf32>
      %150 = arith.addf %148, %149 : vector<16x32xf32>
      %151 = arith.truncf %150 : vector<16x32xf32> to vector<16x32xbf16>
      %c0_62 = arith.constant 0 : index
      %c0_63 = arith.constant 0 : index
      %152 = vector.load %arg5[%c0_62, %c0_63] : memref<32x32xbf16, #tpu.memory_space<vmem>>, vector<32x32xbf16>
      %cst_64 = arith.constant dense<0.000000e+00> : vector<16x32xf32>
      %153 = tpu.matmul %151, %152, %cst_64 {dimension_numbers = #tpu.dot_dimension_numbers<[1], [0], [0], [1], [0, 0, 1, 1], [], []>} : vector<16x32xbf16>, vector<32x32xbf16>, vector<16x32xf32> -> vector<16x32xf32>
      %c0_65 = arith.constant 0 : index
      %c0_66 = arith.constant 0 : index
      %154 = vector.load %arg6[%c0_65, %c0_66] : memref<32x32xbf16, #tpu.memory_space<vmem>>, vector<32x32xbf16>
      %cst_67 = arith.constant dense<0.000000e+00> : vector<16x32xf32>
      %155 = tpu.matmul %151, %154, %cst_67 {dimension_numbers = #tpu.dot_dimension_numbers<[1], [0], [0], [1], [0, 0, 1, 1], [], []>} : vector<16x32xbf16>, vector<32x32xbf16>, vector<16x32xf32> -> vector<16x32xf32>
      %156 = vector.extract_strided_slice %153 {offsets = [0, 0], sizes = [16, 8], strides = [1, 1]} : vector<16x32xf32> to vector<16x8xf32>
      %157 = tpu.transpose %156, [1, 0] : vector<16x8xf32> -> vector<8x16xf32>
      %158 = arith.truncf %157 : vector<8x16xf32> to vector<8x16xbf16>
      %c0_68 = arith.constant 0 : index
      %c0_69 = arith.constant 0 : index
      %c0_70 = arith.constant 0 : index
      %159 = vector.load %arg18[%c0_68, %c0_69, %c0_70] : memref<4x8x16xbf16, #tpu.memory_space<vmem>>, vector<1x8x16xbf16>
      %160 = vector.shape_cast %159 : vector<1x8x16xbf16> to vector<8x16xbf16>
      %161 = vector.shape_cast %158 : vector<8x16xbf16> to vector<1x8x16xbf16>
      tpu.vector_store %arg18[%c0_68, %c0_69, %c0_70], %161 {strides = array<i32>} : memref<4x8x16xbf16, #tpu.memory_space<vmem>>, vector<1x8x16xbf16>,
      %162 = vector.extract_strided_slice %155 {offsets = [0, 0], sizes = [16, 8], strides = [1, 1]} : vector<16x32xf32> to vector<16x8xf32>
      %163 = arith.truncf %162 : vector<16x8xf32> to vector<16x8xbf16>
      %c0_71 = arith.constant 0 : index
      %c0_72 = arith.constant 0 : index
      %c0_73 = arith.constant 0 : index
      %164 = vector.load %arg19[%c0_71, %c0_72, %c0_73] : memref<4x16x8xbf16, #tpu.memory_space<vmem>>, vector<1x16x8xbf16>
      %165 = vector.shape_cast %164 : vector<1x16x8xbf16> to vector<16x8xbf16>
      %166 = vector.shape_cast %163 : vector<16x8xbf16> to vector<1x16x8xbf16>
      tpu.vector_store %arg19[%c0_71, %c0_72, %c0_73], %166 {strides = array<i32>} : memref<4x16x8xbf16, #tpu.memory_space<vmem>>, vector<1x16x8xbf16>,
      %167 = vector.extract_strided_slice %153 {offsets = [0, 8], sizes = [16, 8], strides = [1, 1]} : vector<16x32xf32> to vector<16x8xf32>
      %168 = tpu.transpose %167, [1, 0] : vector<16x8xf32> -> vector<8x16xf32>
      %169 = arith.truncf %168 : vector<8x16xf32> to vector<8x16xbf16>
      %c1 = arith.constant 1 : index
      %c0_74 = arith.constant 0 : index
      %c0_75 = arith.constant 0 : index
      %170 = vector.load %arg18[%c1, %c0_74, %c0_75] : memref<4x8x16xbf16, #tpu.memory_space<vmem>>, vector<1x8x16xbf16>
      %171 = vector.shape_cast %170 : vector<1x8x16xbf16> to vector<8x16xbf16>
      %172 = vector.shape_cast %169 : vector<8x16xbf16> to vector<1x8x16xbf16>
      tpu.vector_store %arg18[%c1, %c0_74, %c0_75], %172 {strides = array<i32>} : memref<4x8x16xbf16, #tpu.memory_space<vmem>>, vector<1x8x16xbf16>,
      %173 = vector.extract_strided_slice %155 {offsets = [0, 8], sizes = [16, 8], strides = [1, 1]} : vector<16x32xf32> to vector<16x8xf32>
      %174 = arith.truncf %173 : vector<16x8xf32> to vector<16x8xbf16>
      %c1_76 = arith.constant 1 : index
      %c0_77 = arith.constant 0 : index
      %c0_78 = arith.constant 0 : index
      %175 = vector.load %arg19[%c1_76, %c0_77, %c0_78] : memref<4x16x8xbf16, #tpu.memory_space<vmem>>, vector<1x16x8xbf16>
      %176 = vector.shape_cast %175 : vector<1x16x8xbf16> to vector<16x8xbf16>
      %177 = vector.shape_cast %174 : vector<16x8xbf16> to vector<1x16x8xbf16>
      tpu.vector_store %arg19[%c1_76, %c0_77, %c0_78], %177 {strides = array<i32>} : memref<4x16x8xbf16, #tpu.memory_space<vmem>>, vector<1x16x8xbf16>,
      %178 = vector.extract_strided_slice %153 {offsets = [0, 16], sizes = [16, 8], strides = [1, 1]} : vector<16x32xf32> to vector<16x8xf32>
      %179 = tpu.transpose %178, [1, 0] : vector<16x8xf32> -> vector<8x16xf32>
      %180 = arith.truncf %179 : vector<8x16xf32> to vector<8x16xbf16>
      %c2 = arith.constant 2 : index
      %c0_79 = arith.constant 0 : index
      %c0_80 = arith.constant 0 : index
      %181 = vector.load %arg18[%c2, %c0_79, %c0_80] : memref<4x8x16xbf16, #tpu.memory_space<vmem>>, vector<1x8x16xbf16>
      %182 = vector.shape_cast %181 : vector<1x8x16xbf16> to vector<8x16xbf16>
      %183 = vector.shape_cast %180 : vector<8x16xbf16> to vector<1x8x16xbf16>
      tpu.vector_store %arg18[%c2, %c0_79, %c0_80], %183 {strides = array<i32>} : memref<4x8x16xbf16, #tpu.memory_space<vmem>>, vector<1x8x16xbf16>,
      %184 = vector.extract_strided_slice %155 {offsets = [0, 16], sizes = [16, 8], strides = [1, 1]} : vector<16x32xf32> to vector<16x8xf32>
      %185 = arith.truncf %184 : vector<16x8xf32> to vector<16x8xbf16>
      %c2_81 = arith.constant 2 : index
      %c0_82 = arith.constant 0 : index
      %c0_83 = arith.constant 0 : index
      %186 = vector.load %arg19[%c2_81, %c0_82, %c0_83] : memref<4x16x8xbf16, #tpu.memory_space<vmem>>, vector<1x16x8xbf16>
      %187 = vector.shape_cast %186 : vector<1x16x8xbf16> to vector<16x8xbf16>
      %188 = vector.shape_cast %185 : vector<16x8xbf16> to vector<1x16x8xbf16>
      tpu.vector_store %arg19[%c2_81, %c0_82, %c0_83], %188 {strides = array<i32>} : memref<4x16x8xbf16, #tpu.memory_space<vmem>>, vector<1x16x8xbf16>,
      %189 = vector.extract_strided_slice %153 {offsets = [0, 24], sizes = [16, 8], strides = [1, 1]} : vector<16x32xf32> to vector<16x8xf32>
      %190 = tpu.transpose %189, [1, 0] : vector<16x8xf32> -> vector<8x16xf32>
      %191 = arith.truncf %190 : vector<8x16xf32> to vector<8x16xbf16>
      %c3 = arith.constant 3 : index
      %c0_84 = arith.constant 0 : index
      %c0_85 = arith.constant 0 : index
      %192 = vector.load %arg18[%c3, %c0_84, %c0_85] : memref<4x8x16xbf16, #tpu.memory_space<vmem>>, vector<1x8x16xbf16>
      %193 = vector.shape_cast %192 : vector<1x8x16xbf16> to vector<8x16xbf16>
      %194 = vector.shape_cast %191 : vector<8x16xbf16> to vector<1x8x16xbf16>
      tpu.vector_store %arg18[%c3, %c0_84, %c0_85], %194 {strides = array<i32>} : memref<4x8x16xbf16, #tpu.memory_space<vmem>>, vector<1x8x16xbf16>,
      %195 = vector.extract_strided_slice %155 {offsets = [0, 24], sizes = [16, 8], strides = [1, 1]} : vector<16x32xf32> to vector<16x8xf32>
      %196 = arith.truncf %195 : vector<16x8xf32> to vector<16x8xbf16>
      %c3_86 = arith.constant 3 : index
      %c0_87 = arith.constant 0 : index
      %c0_88 = arith.constant 0 : index
      %197 = vector.load %arg19[%c3_86, %c0_87, %c0_88] : memref<4x16x8xbf16, #tpu.memory_space<vmem>>, vector<1x16x8xbf16>
      %198 = vector.shape_cast %197 : vector<1x16x8xbf16> to vector<16x8xbf16>
      %199 = vector.shape_cast %196 : vector<16x8xbf16> to vector<1x16x8xbf16>
      tpu.vector_store %arg19[%c3_86, %c0_87, %c0_88], %199 {strides = array<i32>} : memref<4x16x8xbf16, #tpu.memory_space<vmem>>, vector<1x16x8xbf16>,
    } else {
    }
    %c0_4 = arith.constant 0 : index
    %c0_5 = arith.constant 0 : index
    %c0_6 = arith.constant 0 : index
    %5 = vector.load %arg3[%c0_4, %c0_5, %c0_6] : memref<1x8x32xf32, #tpu.memory_space<vmem>>, vector<1x8x32xf32>
    %6 = vector.shape_cast %5 : vector<1x8x32xf32> to vector<8x32xf32>
    %cst = arith.constant dense<0.000000e+00> : vector<8xf32>
    %7 = vector.multi_reduction <add>, %6, %cst [1] : vector<8x32xf32> to vector<8xf32>
    %8 = vector.shape_cast %7 : vector<8xf32> to vector<8x1xf32>
    %cst_7 = arith.constant 3.200000e+01 : f32
    %9 = vector.broadcast %cst_7 : f32 to vector<8x1xf32>
    %10 = arith.divf %8, %9 : vector<8x1xf32>
    %11 = vector.broadcast %10 : vector<8x1xf32> to vector<8x32xf32>
    %12 = arith.subf %6, %11 : vector<8x32xf32>
    %13 = arith.mulf %12, %12 : vector<8x32xf32>
    %cst_8 = arith.constant dense<0.000000e+00> : vector<8xf32>
    %14 = vector.multi_reduction <add>, %13, %cst_8 [1] : vector<8x32xf32> to vector<8xf32>
    %15 = vector.shape_cast %14 : vector<8xf32> to vector<8x1xf32>
    %cst_9 = arith.constant 3.200000e+01 : f32
    %16 = vector.broadcast %cst_9 : f32 to vector<8x1xf32>
    %17 = arith.divf %15, %16 : vector<8x1xf32>
    %18 = vector.broadcast %10 : vector<8x1xf32> to vector<8x32xf32>
    %19 = arith.subf %6, %18 : vector<8x32xf32>
    %cst_10 = arith.constant 9.99999974E-6 : f32
    %20 = vector.broadcast %cst_10 : f32 to vector<8x1xf32>
    %21 = arith.addf %17, %20 : vector<8x1xf32>
    %22 = math.rsqrt %21 : vector<8x1xf32>
    %23 = vector.broadcast %22 : vector<8x1xf32> to vector<8x32xf32>
    %24 = arith.mulf %19, %23 : vector<8x32xf32>
    %25 = vector.broadcast %0 : vector<1x32xf32> to vector<8x32xf32>
    %26 = arith.mulf %24, %25 : vector<8x32xf32>
    %27 = vector.broadcast %1 : vector<1x32xf32> to vector<8x32xf32>
    %28 = arith.addf %26, %27 : vector<8x32xf32>
    %29 = arith.truncf %28 : vector<8x32xf32> to vector<8x32xbf16>
    %c0_11 = arith.constant 0 : index
    %c0_12 = arith.constant 0 : index
    %30 = vector.load %arg4[%c0_11, %c0_12] : memref<32x32xbf16, #tpu.memory_space<vmem>>, vector<32x32xbf16>
    %cst_13 = arith.constant dense<0.000000e+00> : vector<8x32xf32>
    %31 = tpu.matmul %29, %30, %cst_13 {dimension_numbers = #tpu.dot_dimension_numbers<[1], [0], [0], [1], [0, 0, 1, 1], [], []>} : vector<8x32xbf16>, vector<32x32xbf16>, vector<8x32xf32> -> vector<8x32xf32>
    %32 = vector.extract_strided_slice %31 {offsets = [0, 0], sizes = [8, 8], strides = [1, 1]} : vector<8x32xf32> to vector<8x8xf32>
    %33 = vector.extract_strided_slice %31 {offsets = [0, 8], sizes = [8, 8], strides = [1, 1]} : vector<8x32xf32> to vector<8x8xf32>
    %34 = vector.extract_strided_slice %31 {offsets = [0, 16], sizes = [8, 8], strides = [1, 1]} : vector<8x32xf32> to vector<8x8xf32>
    %35 = vector.extract_strided_slice %31 {offsets = [0, 24], sizes = [8, 8], strides = [1, 1]} : vector<8x32xf32> to vector<8x8xf32>
    %36 = vector.shape_cast %32 : vector<8x8xf32> to vector<1x8x8xf32>
    %37 = vector.shape_cast %33 : vector<8x8xf32> to vector<1x8x8xf32>
    %38 = vector.shape_cast %34 : vector<8x8xf32> to vector<1x8x8xf32>
    %39 = vector.shape_cast %35 : vector<8x8xf32> to vector<1x8x8xf32>
    %40 = tpu.concatenate %36, %37, %38, %39 in 0 : vector<1x8x8xf32>, vector<1x8x8xf32>, vector<1x8x8xf32>, vector<1x8x8xf32> -> vector<4x8x8xf32>
    %41 = arith.truncf %40 : vector<4x8x8xf32> to vector<4x8x8xbf16>
    %c0_14 = arith.constant 0 : index
    %c0_15 = arith.constant 0 : index
    %c0_16 = arith.constant 0 : index
    %42 = vector.load %arg18[%c0_14, %c0_15, %c0_16] : memref<4x8x16xbf16, #tpu.memory_space<vmem>>, vector<4x8x16xbf16>
    "tpu.trace_start"() <{level = 10 : i32, message = "hqd,hdk->hqk"}> : () -> ()
    %cst_17 = arith.constant dense<0.000000e+00> : vector<4x8x16xf32>
    %43 = tpu.matmul %41, %42, %cst_17 {dimension_numbers = #tpu.dot_dimension_numbers<[2], [1], [1], [2], [0, 0, 0, 1, 1, 2], [0], [0]>} : vector<4x8x8xbf16>, vector<4x8x16xbf16>, vector<4x8x16xf32> -> vector<4x8x16xf32>
    "tpu.trace_stop"() : () -> ()
    %cst_18 = arith.constant 0.176776692 : f32
    %44 = vector.broadcast %cst_18 : f32 to vector<4x8x16xf32>
    %45 = arith.mulf %43, %44 : vector<4x8x16xf32>
    %c8_i32 = arith.constant 8 : i32
    %46 = arith.muli %arg1, %c8_i32 : i32
    %47 = tpu.iota {dimensions = array<i32: 1>} : vector<1x8x16xi32>
    %48 = vector.broadcast %46 : i32 to vector<1x8x16xi32>
    %49 = arith.addi %48, %47 : vector<1x8x16xi32>
    %50 = tpu.iota {dimensions = array<i32: 2>} : vector<1x8x16xi32>
    %51 = arith.cmpi sge, %49, %50 : vector<1x8x16xi32>
    %cst_19 = arith.constant -1.000000e+30 : f32
    %52 = vector.shape_cast %51 : vector<1x8x16xi1> to vector<1x8x16xi1>
    %53 = vector.broadcast %52 : vector<1x8x16xi1> to vector<4x8x16xi1>
    %54 = vector.broadcast %cst_19 : f32 to vector<4x8x16xf32>
    %55 = arith.select %53, %45, %54 : vector<4x8x16xi1>, vector<4x8x16xf32>
    %cst_20 = arith.constant dense<0xFF800000> : vector<4x8xf32>
    %56 = vector.multi_reduction <maximumf>, %55, %cst_20 [2] : vector<4x8x16xf32> to vector<4x8xf32>
    %57 = vector.shape_cast %56 : vector<4x8xf32> to vector<4x8x1xf32>
    %58 = vector.broadcast %57 : vector<4x8x1xf32> to vector<4x8x16xf32>
    %59 = arith.subf %55, %58 : vector<4x8x16xf32>
    %60 = math.exp %59 : vector<4x8x16xf32>
    %cst_21 = arith.constant dense<0.000000e+00> : vector<4x8xf32>
    %61 = vector.multi_reduction <add>, %60, %cst_21 [2] : vector<4x8x16xf32> to vector<4x8xf32>
    %62 = vector.shape_cast %61 : vector<4x8xf32> to vector<4x8x1xf32>
    %63 = arith.truncf %60 : vector<4x8x16xf32> to vector<4x8x16xbf16>
    %c0_22 = arith.constant 0 : index
    %c0_23 = arith.constant 0 : index
    %c0_24 = arith.constant 0 : index
    %64 = vector.load %arg19[%c0_22, %c0_23, %c0_24] : memref<4x16x8xbf16, #tpu.memory_space<vmem>>, vector<4x16x8xbf16>
    "tpu.trace_start"() <{level = 10 : i32, message = "hqk,hkd->hqd"}> : () -> ()
    %cst_25 = arith.constant dense<0.000000e+00> : vector<4x8x8xf32>
    %65 = tpu.matmul %63, %64, %cst_25 {dimension_numbers = #tpu.dot_dimension_numbers<[2], [1], [1], [2], [0, 0, 0, 1, 1, 2], [0], [0]>} : vector<4x8x16xbf16>, vector<4x16x8xbf16>, vector<4x8x8xf32> -> vector<4x8x8xf32>
    "tpu.trace_stop"() : () -> ()
    %66 = tpu.reciprocal %62 {approx = true} : vector<4x8x1xf32> -> vector<4x8x1xf32>
    %67 = vector.broadcast %66 : vector<4x8x1xf32> to vector<4x8x8xf32>
    %68 = arith.mulf %65, %67 : vector<4x8x8xf32>
    %69 = vector.extract_strided_slice %68 {offsets = [0, 0, 0], sizes = [1, 8, 8], strides = [1, 1, 1]} : vector<4x8x8xf32> to vector<1x8x8xf32>
    %70 = vector.shape_cast %69 : vector<1x8x8xf32> to vector<8x8xf32>
    %71 = vector.extract_strided_slice %68 {offsets = [1, 0, 0], sizes = [1, 8, 8], strides = [1, 1, 1]} : vector<4x8x8xf32> to vector<1x8x8xf32>
    %72 = vector.shape_cast %71 : vector<1x8x8xf32> to vector<8x8xf32>
    %73 = vector.extract_strided_slice %68 {offsets = [2, 0, 0], sizes = [1, 8, 8], strides = [1, 1, 1]} : vector<4x8x8xf32> to vector<1x8x8xf32>
    %74 = vector.shape_cast %73 : vector<1x8x8xf32> to vector<8x8xf32>
    %75 = vector.extract_strided_slice %68 {offsets = [3, 0, 0], sizes = [1, 8, 8], strides = [1, 1, 1]} : vector<4x8x8xf32> to vector<1x8x8xf32>
    %76 = vector.shape_cast %75 : vector<1x8x8xf32> to vector<8x8xf32>
    %77 = tpu.concatenate %70, %72, %74, %76 in 1 : vector<8x8xf32>, vector<8x8xf32>, vector<8x8xf32>, vector<8x8xf32> -> vector<8x32xf32>
    %78 = arith.truncf %77 : vector<8x32xf32> to vector<8x32xbf16>
    %c0_26 = arith.constant 0 : index
    %c0_27 = arith.constant 0 : index
    %79 = vector.load %arg7[%c0_26, %c0_27] : memref<32x32xbf16, #tpu.memory_space<vmem>>, vector<32x32xbf16>
    %cst_28 = arith.constant dense<0.000000e+00> : vector<8x32xf32>
    %80 = tpu.matmul %78, %79, %cst_28 {dimension_numbers = #tpu.dot_dimension_numbers<[1], [0], [0], [1], [0, 0, 1, 1], [], []>} : vector<8x32xbf16>, vector<32x32xbf16>, vector<8x32xf32> -> vector<8x32xf32>
    %c0_29 = arith.constant 0 : index
    %c0_30 = arith.constant 0 : index
    %81 = vector.load %arg8[%c0_29, %c0_30] : memref<1x32xf32, #tpu.memory_space<vmem>>, vector<1x32xf32>
    %82 = vector.broadcast %81 : vector<1x32xf32> to vector<8x32xf32>
    %83 = arith.addf %80, %82 : vector<8x32xf32>
    %84 = arith.addf %6, %83 : vector<8x32xf32>
    %c0_31 = arith.constant 0 : index
    %c0_32 = arith.constant 0 : index
    %85 = vector.load %arg15[%c0_31, %c0_32] : memref<1x32xf32, #tpu.memory_space<vmem>>, vector<1x32xf32>
    %c0_33 = arith.constant 0 : index
    %c0_34 = arith.constant 0 : index
    %86 = vector.load %arg16[%c0_33, %c0_34] : memref<1x32xf32, #tpu.memory_space<vmem>>, vector<1x32xf32>
    %cst_35 = arith.constant dense<0.000000e+00> : vector<8xf32>
    %87 = vector.multi_reduction <add>, %84, %cst_35 [1] : vector<8x32xf32> to vector<8xf32>
    %88 = vector.shape_cast %87 : vector<8xf32> to vector<8x1xf32>
    %cst_36 = arith.constant 3.200000e+01 : f32
    %89 = vector.broadcast %cst_36 : f32 to vector<8x1xf32>
    %90 = arith.divf %88, %89 : vector<8x1xf32>
    %91 = vector.broadcast %90 : vector<8x1xf32> to vector<8x32xf32>
    %92 = arith.subf %84, %91 : vector<8x32xf32>
    %93 = arith.mulf %92, %92 : vector<8x32xf32>
    %cst_37 = arith.constant dense<0.000000e+00> : vector<8xf32>
    %94 = vector.multi_reduction <add>, %93, %cst_37 [1] : vector<8x32xf32> to vector<8xf32>
    %95 = vector.shape_cast %94 : vector<8xf32> to vector<8x1xf32>
    %cst_38 = arith.constant 3.200000e+01 : f32
    %96 = vector.broadcast %cst_38 : f32 to vector<8x1xf32>
    %97 = arith.divf %95, %96 : vector<8x1xf32>
    %98 = vector.broadcast %90 : vector<8x1xf32> to vector<8x32xf32>
    %99 = arith.subf %84, %98 : vector<8x32xf32>
    %cst_39 = arith.constant 9.99999974E-6 : f32
    %100 = vector.broadcast %cst_39 : f32 to vector<8x1xf32>
    %101 = arith.addf %97, %100 : vector<8x1xf32>
    %102 = math.rsqrt %101 : vector<8x1xf32>
    %103 = vector.broadcast %102 : vector<8x1xf32> to vector<8x32xf32>
    %104 = arith.mulf %99, %103 : vector<8x32xf32>
    %105 = vector.broadcast %85 : vector<1x32xf32> to vector<8x32xf32>
    %106 = arith.mulf %104, %105 : vector<8x32xf32>
    %107 = vector.broadcast %86 : vector<1x32xf32> to vector<8x32xf32>
    %108 = arith.addf %106, %107 : vector<8x32xf32>
    %109 = arith.truncf %108 : vector<8x32xf32> to vector<8x32xbf16>
    %c0_40 = arith.constant 0 : index
    %c0_41 = arith.constant 0 : index
    %110 = vector.load %arg9[%c0_40, %c0_41] : memref<32x128xbf16, #tpu.memory_space<vmem>>, vector<32x128xbf16>
    %cst_42 = arith.constant dense<0.000000e+00> : vector<8x128xf32>
    %111 = tpu.matmul %109, %110, %cst_42 {dimension_numbers = #tpu.dot_dimension_numbers<[1], [0], [0], [1], [0, 0, 1, 1], [], []>} : vector<8x32xbf16>, vector<32x128xbf16>, vector<8x128xf32> -> vector<8x128xf32>
    %c0_43 = arith.constant 0 : index
    %c0_44 = arith.constant 0 : index
    %112 = vector.load %arg10[%c0_43, %c0_44] : memref<1x128xf32, #tpu.memory_space<vmem>>, vector<1x128xf32>
    %113 = vector.broadcast %112 : vector<1x128xf32> to vector<8x128xf32>
    %114 = arith.addf %111, %113 : vector<8x128xf32>
    %cst_45 = arith.constant 0.000000e+00 : f32
    %115 = vector.broadcast %cst_45 : f32 to vector<8x128xf32>
    %116 = arith.maximumf %114, %115 : vector<8x128xf32>
    %117 = arith.truncf %116 : vector<8x128xf32> to vector<8x128xbf16>
    %c0_46 = arith.constant 0 : index
    %c0_47 = arith.constant 0 : index
    %118 = vector.load %arg11[%c0_46, %c0_47] : memref<128x32xbf16, #tpu.memory_space<vmem>>, vector<128x32xbf16>
    %cst_48 = arith.constant dense<0.000000e+00> : vector<8x32xf32>
    %119 = tpu.matmul %117, %118, %cst_48 {dimension_numbers = #tpu.dot_dimension_numbers<[1], [0], [0], [1], [0, 0, 1, 1], [], []>} : vector<8x128xbf16>, vector<128x32xbf16>, vector<8x32xf32> -> vector<8x32xf32>
    %c0_49 = arith.constant 0 : index
    %c0_50 = arith.constant 0 : index
    %120 = vector.load %arg12[%c0_49, %c0_50] : memref<1x32xf32, #tpu.memory_space<vmem>>, vector<1x32xf32>
    %121 = vector.broadcast %120 : vector<1x32xf32> to vector<8x32xf32>
    %122 = arith.addf %119, %121 : vector<8x32xf32>
    %123 = arith.addf %84, %122 : vector<8x32xf32>
    %c0_51 = arith.constant 0 : index
    %c0_52 = arith.constant 0 : index
    %c0_53 = arith.constant 0 : index
    %124 = vector.load %arg17[%c0_51, %c0_52, %c0_53] : memref<1x8x32xf32, #tpu.memory_space<vmem>>, vector<1x8x32xf32>
    %125 = vector.shape_cast %124 : vector<1x8x32xf32> to vector<8x32xf32>
    %126 = vector.shape_cast %123 : vector<8x32xf32> to vector<1x8x32xf32>
    tpu.vector_store %arg17[%c0_51, %c0_52, %c0_53], %126 {strides = array<i32>} : memref<1x8x32xf32, #tpu.memory_space<vmem>>, vector<1x8x32xf32>,
    return
  }
  func.func @transform_0(%arg0: i32, %arg1: i32) -> (i32, i32, i32) {
    %c0_i32 = arith.constant 0 : i32
    %c0_i32_0 = arith.constant 0 : i32
    %c0_i32_1 = arith.constant 0 : i32
    return %arg0, %c0_i32, %c0_i32_0 : i32, i32, i32
  }
  func.func @transform_1(%arg0: i32, %arg1: i32) -> (i32, i32, i32) {
    %c0_i32 = arith.constant 0 : i32
    %c0_i32_0 = arith.constant 0 : i32
    return %arg0, %arg1, %c0_i32 : i32, i32, i32
  }
  func.func @transform_2(%arg0: i32, %arg1: i32) -> (i32, i32) {
    %c0_i32 = arith.constant 0 : i32
    %c0_i32_0 = arith.constant 0 : i32
    %c0_i32_1 = arith.constant 0 : i32
    return %c0_i32, %c0_i32_0 : i32, i32
  }
  func.func @transform_3(%arg0: i32, %arg1: i32) -> (i32, i32) {
    %c0_i32 = arith.constant 0 : i32
    %c0_i32_0 = arith.constant 0 : i32
    %c0_i32_1 = arith.constant 0 : i32
    return %c0_i32, %c0_i32_0 : i32, i32
  }
  func.func @transform_4(%arg0: i32, %arg1: i32) -> (i32, i32) {
    %c0_i32 = arith.constant 0 : i32
    %c0_i32_0 = arith.constant 0 : i32
    %c0_i32_1 = arith.constant 0 : i32
    return %c0_i32, %c0_i32_0 : i32, i32
  }
  func.func @transform_5(%arg0: i32, %arg1: i32) -> (i32, i32) {
    %c0_i32 = arith.constant 0 : i32
    %c0_i32_0 = arith.constant 0 : i32
    %c0_i32_1 = arith.constant 0 : i32
    return %c0_i32, %c0_i32_0 : i32, i32
  }
  func.func @transform_6(%arg0: i32, %arg1: i32) -> (i32, i32) {
    %c0_i32 = arith.constant 0 : i32
    %c0_i32_0 = arith.constant 0 : i32
    %c0_i32_1 = arith.constant 0 : i32
    return %c0_i32, %c0_i32_0 : i32, i32
  }
  func.func @transform_7(%arg0: i32, %arg1: i32) -> (i32, i32) {
    %c0_i32 = arith.constant 0 : i32
    %c0_i32_0 = arith.constant 0 : i32
    %c0_i32_1 = arith.constant 0 : i32
    return %c0_i32, %c0_i32_0 : i32, i32
  }
  func.func @transform_8(%arg0: i32, %arg1: i32) -> (i32, i32) {
    %c0_i32 = arith.constant 0 : i32
    %c0_i32_0 = arith.constant 0 : i32
    %c0_i32_1 = arith.constant 0 : i32
    return %c0_i32, %c0_i32_0 : i32, i32
  }
  func.func @transform_9(%arg0: i32, %arg1: i32) -> (i32, i32) {
    %c0_i32 = arith.constant 0 : i32
    %c0_i32_0 = arith.constant 0 : i32
    %c0_i32_1 = arith.constant 0 : i32
    return %c0_i32, %c0_i32_0 : i32, i32
  }
  func.func @transform_10(%arg0: i32, %arg1: i32) -> (i32, i32) {
    %c0_i32 = arith.constant 0 : i32
    %c0_i32_0 = arith.constant 0 : i32
    %c0_i32_1 = arith.constant 0 : i32
    return %c0_i32, %c0_i32_0 : i32, i32
  }
  func.func @transform_11(%arg0: i32, %arg1: i32) -> (i32, i32) {
    %c0_i32 = arith.constant 0 : i32
    %c0_i32_0 = arith.constant 0 : i32
    %c0_i32_1 = arith.constant 0 : i32
    return %c0_i32, %c0_i32_0 : i32, i32
  }
  func.func @transform_12(%arg0: i32, %arg1: i32) -> (i32, i32) {
    %c0_i32 = arith.constant 0 : i32
    %c0_i32_0 = arith.constant 0 : i32
    %c0_i32_1 = arith.constant 0 : i32
    return %c0_i32, %c0_i32_0 : i32, i32
  }
  func.func @transform_13(%arg0: i32, %arg1: i32) -> (i32, i32) {
    %c0_i32 = arith.constant 0 : i32
    %c0_i32_0 = arith.constant 0 : i32
    %c0_i32_1 = arith.constant 0 : i32
    return %c0_i32, %c0_i32_0 : i32, i32
  }
  func.func @transform_14(%arg0: i32, %arg1: i32) -> (i32, i32) {
    %c0_i32 = arith.constant 0 : i32
    %c0_i32_0 = arith.constant 0 : i32
    %c0_i32_1 = arith.constant 0 : i32
    return %c0_i32, %c0_i32_0 : i32, i32
  }
  func.func @transform_15(%arg0: i32, %arg1: i32) -> (i32, i32, i32) {
    %c0_i32 = arith.constant 0 : i32
    %c0_i32_0 = arith.constant 0 : i32
    return %arg0, %arg1, %c0_i32 : i32, i32, i32
  }
}

</mosaic_0001>

<llo_original>
// kernel: tpu_custom_call.1
$region0: #{tpu_custom_call.1}
  #allocation0 [shape = 'u32[]', space=smem, size = 0x4, offset = 0x4, fixed_abs, tag = 'smem constant byte address 0x4 - core index']
  #allocation1 [shape = 'u32[144,128]{1,0:T(1,128)}', space=vmem, size = 0x12000, scoped, tag = 'internal scratch']
  #allocation2 [shape = 'bf16[4,8,16]{2,1,0:T(8,128)(2,1)}', space=vmem, size = 0x2000, scoped, tag = 'scratch operand']
  #allocation3 [shape = 'bf16[4,16,8]{2,1,0:T(16,128)(2,1)}', space=vmem, size = 0x4000, scoped, tag = 'scratch operand']
  %s0 = inlined_call_operand.vmem [shape: f32[2,16,32], index: 0, kind: input, shape index: {}]
  %s1 = inlined_call_operand.vmem [shape: f32[2,16,32], index: 1, kind: input, shape index: {}]
  %s2 = inlined_call_operand.vmem [shape: bf16[32,32], index: 2, kind: input, shape index: {}]
  %s3 = inlined_call_operand.hbm [shape: bf16[32,32], index: 3, kind: input, shape index: {}]
  %s4 = inlined_call_operand.hbm [shape: bf16[32,32], index: 4, kind: input, shape index: {}]
  %s5 = inlined_call_operand.hbm [shape: bf16[32,32], index: 5, kind: input, shape index: {}]
  %s6 = inlined_call_operand.vmem [shape: f32[1,32], index: 6, kind: input, shape index: {}]
  %s7 = inlined_call_operand.hbm [shape: bf16[32,128], index: 7, kind: input, shape index: {}]
  %s8 = inlined_call_operand.vmem [shape: f32[1,128], index: 8, kind: input, shape index: {}]
  %s9 = inlined_call_operand.vmem [shape: bf16[128,32], index: 9, kind: input, shape index: {}]
  %s10 = inlined_call_operand.vmem [shape: f32[1,32], index: 10, kind: input, shape index: {}]
  %s11 = inlined_call_operand.vmem [shape: f32[1,32], index: 11, kind: input, shape index: {}]
  %s12 = inlined_call_operand.vmem [shape: f32[1,32], index: 12, kind: input, shape index: {}]
  %s13 = inlined_call_operand.vmem [shape: f32[1,32], index: 13, kind: input, shape index: {}]
  %s14 = inlined_call_operand.vmem [shape: f32[1,32], index: 14, kind: input, shape index: {}]
  %s15 = inlined_call_operand.hbm [shape: f32[2,16,32], index: 15, kind: output, shape index: {}]
  %s16 = sld [smem:[#allocation0]]
  $region113: #{tpu_custom_call.1} parent=0
    _
  %s18 = ssub.s32 1, %s16
  %s19 = scalar_select 0, %s18, %s16
  $region1: #{tpu_custom_call.1} parent=0
    #allocation4 [shape = 'u8[8192]{0}', space=vmem, size = 0x2000, scoped, tag = 'input window, operand 3, single buffered']
    #allocation5 [shape = 's32[2]{0}', space=sflag, size = 0x8, scoped, tag = 'scoped memory for tpu_custom_call.1']
    #allocation6 [shape = 's32[2]{0}', space=sflag, size = 0x8, scoped, tag = 'scoped memory for tpu_custom_call.1']
    #allocation7 [shape = 'u8[8192]{0}', space=vmem, size = 0x2000, scoped, tag = 'input window, operand 4, single buffered']
    #allocation8 [shape = 's32[1]{0}', space=sflag, size = 0x4, scoped, tag = 'scoped memory for tpu_custom_call.1']
    #allocation9 [shape = 'u8[8192]{0}', space=vmem, size = 0x2000, scoped, tag = 'input window, operand 5, single buffered']
    #allocation10 [shape = 'u8[8192]{0}', space=vmem, size = 0x2000, scoped, tag = 'input window, operand 7, single buffered']
    #allocation11 [shape = 's32[1]{0}', space=sflag, size = 0x4, scoped, tag = 'scoped memory for tpu_custom_call.1']
    #allocation12 [shape = 'u8[8192]{0}', space=vmem, size = 0x2000, scoped, tag = 'output window, operand 0']
    %20 = vsyncpa [#allocation5], 0
    %21 = vsyncpa [#allocation8], 0
    %22 = vsyncpa [#allocation11], 0
    %23 = vsyncpa [#allocation6], 0
    %s24 = scalar_lea.sflag [#allocation6], 1
    %25 = vsyncpa %s24, 0
    loop: start=0, step=1, limit=6
    $region2: #{tpu_custom_call.1} parent=1 // loop_pre_header
      _
    $region3: #{tpu_custom_call.1} parent=1 // loop_header
      %s27 = sphi 0, %s31
      %p28 = scmp.ge.s32.totalorder %s27, 6
      %s34 = sphi 0, %s46
      %s35 = sphi 0, %s42
      %s36 = sphi 0, %s34
      %s37 = sphi 0, %s35
      %s38 = sphi 0, %s36
      %s39 = sphi 0, %s37
      %s49 = sphi 0, %s51
      %s52 = sphi 0, %s49
      %s53 = sphi 0, %s52
      %s69 = sphi 0, %s53
      %s77 = sphi 0, %s79
      %s80 = sphi 0, %s77
      %s81 = sphi 0, %s80
      %s97 = sphi 0, %s81
      %s101 = sphi 0, %s101
      %s103 = sphi 0, %s101
      %s104 = sphi 0, %s103
      %s118 = sphi 0, %s104
      %s122 = sphi 0, %s122
      %s124 = sphi 0, %s122
      %s125 = sphi 0, %s124
      %s139 = sphi 0, %s125
      %s143 = sphi 0, %s143
      %s145 = sphi 0, %s143
      %s146 = sphi 0, %s145
      %s160 = sphi 0, %s146
      %s164 = sphi 0, %s164
      %s166 = sphi 0, %s164
      %s167 = sphi 0, %s166
      %s181 = sphi 0, %s167
      %s185 = sphi 0, %s185
      %s187 = sphi 0, %s185
      %s188 = sphi 0, %s187
      %s202 = sphi 0, %s188
      %s206 = sphi 0, %s206
      %s208 = sphi 0, %s206
      %s209 = sphi 0, %s208
      %s223 = sphi 0, %s209
      %s227 = sphi 0, %s227
      %s229 = sphi 0, %s227
      %s230 = sphi 0, %s229
      %s244 = sphi 0, %s230
      %s248 = sphi 0, %s248
      %s250 = sphi 0, %s248
      %s251 = sphi 0, %s250
      %s265 = sphi 0, %s251
      %s269 = sphi 0, %s269
      %s271 = sphi 0, %s269
      %s272 = sphi 0, %s271
      %s286 = sphi 0, %s272
      %s290 = sphi 0, %s290
      %s292 = sphi 0, %s290
      %s293 = sphi 0, %s292
      %s307 = sphi 0, %s293
      %s311 = sphi 0, %s311
      %s313 = sphi 0, %s311
      %s314 = sphi 0, %s313
      %s328 = sphi 0, %s314
      %s332 = sphi 0, %s332
      %s334 = sphi 0, %s332
      %s335 = sphi 0, %s334
      %s349 = sphi 0, %s335
      %s353 = sphi 0, %s353
      %s355 = sphi 0, %s353
      %s356 = sphi 0, %s355
      %s370 = sphi 0, %s356
      %s378 = sphi 0, %s380
      %s381 = sphi 0, %s378
      %s382 = sphi 0, %s381
      %s398 = sphi 0, %s382
    $region4: #{tpu_custom_call.1} parent=1 // loop_header_branch
      %30 = sbr.rel (%p28) target = $region8
    $region5: #{tpu_custom_call.1} parent=1 // loop_body
      %s32 = ssub.s32 %s27, 1
      %s33 = ssub.s32 %s27, 2
      %s40 = sadd.s32 1, %s35
      %p41 = scmp.ge.s32.totalorder %s40, 2
      %s42 = scalar_select %p41, 0, %s40
      %s43 = sadd.s32 1, %s34
      %s44 = scalar_select %p41, %s43, %s34
      %p45 = scmp.ge.s32.totalorder %s44, 2
      %s46 = scalar_select %p45, 0, %s44
      %s47 = ssub.s32 %s34, %s46
      %p48 = scmp.eq.s32.totalorder %s47, 0
      %s50 = sadd.s32 %s49, 1
      %s51 = scalar_select %p48, %s49, %s50
      %p54 = pneg %p48
      %p55 = scmp.eq.s32.totalorder %s27, 3
      %p56 = por %p54, %p55
      %p57 = scmp.ne.s32.totalorder %s49, %s52
      %p58 = scmp.eq.s32.totalorder %s27, 0
      %p59 = por %p57, %p58
      %p60 = scmp.ne.s32.totalorder %s49, %s52
      %p61 = scmp.eq.s32.totalorder %s32, 3
      %p62 = por %p60, %p61
      %p63 = scmp.ne.s32.totalorder %s52, %s53
      %p64 = scmp.eq.s32.totalorder %s32, 0
      %p65 = por %p63, %p64
      %p66 = scmp.ne.s32.totalorder %s52, %s53
      %p67 = scmp.eq.s32.totalorder %s33, 3
      %p68 = por %p66, %p67
      %p70 = scmp.ne.s32.totalorder %s53, %s69
      %p71 = scmp.eq.s32.totalorder %s33, 0
      %p72 = por %p70, %p71
      %s73 = ssub.s32 %s34, %s46
      %s74 = ssub.s32 %s35, %s42
      %s75 = sor.u32 %s73, %s74
      %p76 = scmp.eq.s32.totalorder %s75, 0
      %s78 = sadd.s32 %s77, 1
      %s79 = scalar_select %p76, %s77, %s78
      %p82 = pneg %p76
      %p83 = scmp.eq.s32.totalorder %s27, 3
      %p84 = por %p82, %p83
      %p85 = scmp.ne.s32.totalorder %s77, %s80
      %p86 = scmp.eq.s32.totalorder %s27, 0
      %p87 = por %p85, %p86
      %p88 = scmp.ne.s32.totalorder %s77, %s80
      %p89 = scmp.eq.s32.totalorder %s32, 3
      %p90 = por %p88, %p89
      %p91 = scmp.ne.s32.totalorder %s80, %s81
      %p92 = scmp.eq.s32.totalorder %s32, 0
      %p93 = por %p91, %p92
      %p94 = scmp.ne.s32.totalorder %s80, %s81
      %p95 = scmp.eq.s32.totalorder %s33, 3
      %p96 = por %p94, %p95
      %p98 = scmp.ne.s32.totalorder %s81, %s97
      %p99 = scmp.eq.s32.totalorder %s33, 0
      %p100 = por %p98, %p99
      %s102 = sadd.s32 %s101, 1
      %p105 = scmp.eq.s32.totalorder %s27, 3
      %p106 = scmp.ne.s32.totalorder %s101, %s103
      %p107 = scmp.eq.s32.totalorder %s27, 0
      %p108 = por %p106, %p107
      %p109 = scmp.ne.s32.totalorder %s101, %s103
      %p110 = scmp.eq.s32.totalorder %s32, 3
      %p111 = por %p109, %p110
      %p112 = scmp.ne.s32.totalorder %s103, %s104
      %p113 = scmp.eq.s32.totalorder %s32, 0
      %p114 = por %p112, %p113
      %p115 = scmp.ne.s32.totalorder %s103, %s104
      %p116 = scmp.eq.s32.totalorder %s33, 3
      %p117 = por %p115, %p116
      %p119 = scmp.ne.s32.totalorder %s104, %s118
      %p120 = scmp.eq.s32.totalorder %s33, 0
      %p121 = por %p119, %p120
      %s123 = sadd.s32 %s122, 1
      %p126 = scmp.eq.s32.totalorder %s27, 3
      %p127 = scmp.ne.s32.totalorder %s122, %s124
      %p128 = scmp.eq.s32.totalorder %s27, 0
      %p129 = por %p127, %p128
      %p130 = scmp.ne.s32.totalorder %s122, %s124
      %p131 = scmp.eq.s32.totalorder %s32, 3
      %p132 = por %p130, %p131
      %p133 = scmp.ne.s32.totalorder %s124, %s125
      %p134 = scmp.eq.s32.totalorder %s32, 0
      %p135 = por %p133, %p134
      %p136 = scmp.ne.s32.totalorder %s124, %s125
      %p137 = scmp.eq.s32.totalorder %s33, 3
      %p138 = por %p136, %p137
      %p140 = scmp.ne.s32.totalorder %s125, %s139
      %p141 = scmp.eq.s32.totalorder %s33, 0
      %p142 = por %p140, %p141
      %s144 = sadd.s32 %s143, 1
      %p147 = scmp.eq.s32.totalorder %s27, 3
      %p148 = scmp.ne.s32.totalorder %s143, %s145
      %p149 = scmp.eq.s32.totalorder %s27, 0
      %p150 = por %p148, %p149
      %p151 = scmp.ne.s32.totalorder %s143, %s145
      %p152 = scmp.eq.s32.totalorder %s32, 3
      %p153 = por %p151, %p152
      %p154 = scmp.ne.s32.totalorder %s145, %s146
      %p155 = scmp.eq.s32.totalorder %s32, 0
      %p156 = por %p154, %p155
      %p157 = scmp.ne.s32.totalorder %s145, %s146
      %p158 = scmp.eq.s32.totalorder %s33, 3
      %p159 = por %p157, %p158
      %p161 = scmp.ne.s32.totalorder %s146, %s160
      %p162 = scmp.eq.s32.totalorder %s33, 0
      %p163 = por %p161, %p162
      %s165 = sadd.s32 %s164, 1
      %p168 = scmp.eq.s32.totalorder %s27, 3
      %p169 = scmp.ne.s32.totalorder %s164, %s166
      %p170 = scmp.eq.s32.totalorder %s27, 0
      %p171 = por %p169, %p170
      %p172 = scmp.ne.s32.totalorder %s164, %s166
      %p173 = scmp.eq.s32.totalorder %s32, 3
      %p174 = por %p172, %p173
      %p175 = scmp.ne.s32.totalorder %s166, %s167
      %p176 = scmp.eq.s32.totalorder %s32, 0
      %p177 = por %p175, %p176
      %p178 = scmp.ne.s32.totalorder %s166, %s167
      %p179 = scmp.eq.s32.totalorder %s33, 3
      %p180 = por %p178, %p179
      %p182 = scmp.ne.s32.totalorder %s167, %s181
      %p183 = scmp.eq.s32.totalorder %s33, 0
      %p184 = por %p182, %p183
      %s186 = sadd.s32 %s185, 1
      %p189 = scmp.eq.s32.totalorder %s27, 3
      %p190 = scmp.ne.s32.totalorder %s185, %s187
      %p191 = scmp.eq.s32.totalorder %s27, 0
      %p192 = por %p190, %p191
      %p193 = scmp.ne.s32.totalorder %s185, %s187
      %p194 = scmp.eq.s32.totalorder %s32, 3
      %p195 = por %p193, %p194
      %p196 = scmp.ne.s32.totalorder %s187, %s188
      %p197 = scmp.eq.s32.totalorder %s32, 0
      %p198 = por %p196, %p197
      %p199 = scmp.ne.s32.totalorder %s187, %s188
      %p200 = scmp.eq.s32.totalorder %s33, 3
      %p201 = por %p199, %p200
      %p203 = scmp.ne.s32.totalorder %s188, %s202
      %p204 = scmp.eq.s32.totalorder %s33, 0
      %p205 = por %p203, %p204
      %s207 = sadd.s32 %s206, 1
      %p210 = scmp.eq.s32.totalorder %s27, 3
      %p211 = scmp.ne.s32.totalorder %s206, %s208
      %p212 = scmp.eq.s32.totalorder %s27, 0
      %p213 = por %p211, %p212
      %p214 = scmp.ne.s32.totalorder %s206, %s208
      %p215 = scmp.eq.s32.totalorder %s32, 3
      %p216 = por %p214, %p215
      %p217 = scmp.ne.s32.totalorder %s208, %s209
      %p218 = scmp.eq.s32.totalorder %s32, 0
      %p219 = por %p217, %p218
      %p220 = scmp.ne.s32.totalorder %s208, %s209
      %p221 = scmp.eq.s32.totalorder %s33, 3
      %p222 = por %p220, %p221
      %p224 = scmp.ne.s32.totalorder %s209, %s223
      %p225 = scmp.eq.s32.totalorder %s33, 0
      %p226 = por %p224, %p225
      %s228 = sadd.s32 %s227, 1
      %p231 = scmp.eq.s32.totalorder %s27, 3
      %p232 = scmp.ne.s32.totalorder %s227, %s229
      %p233 = scmp.eq.s32.totalorder %s27, 0
      %p234 = por %p232, %p233
      %p235 = scmp.ne.s32.totalorder %s227, %s229
      %p236 = scmp.eq.s32.totalorder %s32, 3
      %p237 = por %p235, %p236
      %p238 = scmp.ne.s32.totalorder %s229, %s230
      %p239 = scmp.eq.s32.totalorder %s32, 0
      %p240 = por %p238, %p239
      %p241 = scmp.ne.s32.totalorder %s229, %s230
      %p242 = scmp.eq.s32.totalorder %s33, 3
      %p243 = por %p241, %p242
      %p245 = scmp.ne.s32.totalorder %s230, %s244
      %p246 = scmp.eq.s32.totalorder %s33, 0
      %p247 = por %p245, %p246
      %s249 = sadd.s32 %s248, 1
      %p252 = scmp.eq.s32.totalorder %s27, 3
      %p253 = scmp.ne.s32.totalorder %s248, %s250
      %p254 = scmp.eq.s32.totalorder %s27, 0
      %p255 = por %p253, %p254
      %p256 = scmp.ne.s32.totalorder %s248, %s250
      %p257 = scmp.eq.s32.totalorder %s32, 3
      %p258 = por %p256, %p257
      %p259 = scmp.ne.s32.totalorder %s250, %s251
      %p260 = scmp.eq.s32.totalorder %s32, 0
      %p261 = por %p259, %p260
      %p262 = scmp.ne.s32.totalorder %s250, %s251
      %p263 = scmp.eq.s32.totalorder %s33, 3
      %p264 = por %p262, %p263
      %p266 = scmp.ne.s32.totalorder %s251, %s265
      %p267 = scmp.eq.s32.totalorder %s33, 0
      %p268 = por %p266, %p267
      %s270 = sadd.s32 %s269, 1
      %p273 = scmp.eq.s32.totalorder %s27, 3
      %p274 = scmp.ne.s32.totalorder %s269, %s271
      %p275 = scmp.eq.s32.totalorder %s27, 0
      %p276 = por %p274, %p275
      %p277 = scmp.ne.s32.totalorder %s269, %s271
      %p278 = scmp.eq.s32.totalorder %s32, 3
      %p279 = por %p277, %p278
      %p280 = scmp.ne.s32.totalorder %s271, %s272
      %p281 = scmp.eq.s32.totalorder %s32, 0
      %p282 = por %p280, %p281
      %p283 = scmp.ne.s32.totalorder %s271, %s272
      %p284 = scmp.eq.s32.totalorder %s33, 3
      %p285 = por %p283, %p284
      %p287 = scmp.ne.s32.totalorder %s272, %s286
      %p288 = scmp.eq.s32.totalorder %s33, 0
      %p289 = por %p287, %p288
      %s291 = sadd.s32 %s290, 1
      %p294 = scmp.eq.s32.totalorder %s27, 3
      %p295 = scmp.ne.s32.totalorder %s290, %s292
      %p296 = scmp.eq.s32.totalorder %s27, 0
      %p297 = por %p295, %p296
      %p298 = scmp.ne.s32.totalorder %s290, %s292
      %p299 = scmp.eq.s32.totalorder %s32, 3
      %p300 = por %p298, %p299
      %p301 = scmp.ne.s32.totalorder %s292, %s293
      %p302 = scmp.eq.s32.totalorder %s32, 0
      %p303 = por %p301, %p302
      %p304 = scmp.ne.s32.totalorder %s292, %s293
      %p305 = scmp.eq.s32.totalorder %s33, 3
      %p306 = por %p304, %p305
      %p308 = scmp.ne.s32.totalorder %s293, %s307
      %p309 = scmp.eq.s32.totalorder %s33, 0
      %p310 = por %p308, %p309
      %s312 = sadd.s32 %s311, 1
      %p315 = scmp.eq.s32.totalorder %s27, 3
      %p316 = scmp.ne.s32.totalorder %s311, %s313
      %p317 = scmp.eq.s32.totalorder %s27, 0
      %p318 = por %p316, %p317
      %p319 = scmp.ne.s32.totalorder %s311, %s313
      %p320 = scmp.eq.s32.totalorder %s32, 3
      %p321 = por %p319, %p320
      %p322 = scmp.ne.s32.totalorder %s313, %s314
      %p323 = scmp.eq.s32.totalorder %s32, 0
      %p324 = por %p322, %p323
      %p325 = scmp.ne.s32.totalorder %s313, %s314
      %p326 = scmp.eq.s32.totalorder %s33, 3
      %p327 = por %p325, %p326
      %p329 = scmp.ne.s32.totalorder %s314, %s328
      %p330 = scmp.eq.s32.totalorder %s33, 0
      %p331 = por %p329, %p330
      %s333 = sadd.s32 %s332, 1
      %p336 = scmp.eq.s32.totalorder %s27, 3
      %p337 = scmp.ne.s32.totalorder %s332, %s334
      %p338 = scmp.eq.s32.totalorder %s27, 0
      %p339 = por %p337, %p338
      %p340 = scmp.ne.s32.totalorder %s332, %s334
      %p341 = scmp.eq.s32.totalorder %s32, 3
      %p342 = por %p340, %p341
      %p343 = scmp.ne.s32.totalorder %s334, %s335
      %p344 = scmp.eq.s32.totalorder %s32, 0
      %p345 = por %p343, %p344
      %p346 = scmp.ne.s32.totalorder %s334, %s335
      %p347 = scmp.eq.s32.totalorder %s33, 3
      %p348 = por %p346, %p347
      %p350 = scmp.ne.s32.totalorder %s335, %s349
      %p351 = scmp.eq.s32.totalorder %s33, 0
      %p352 = por %p350, %p351
      %s354 = sadd.s32 %s353, 1
      %p357 = scmp.eq.s32.totalorder %s27, 3
      %p358 = scmp.ne.s32.totalorder %s353, %s355
      %p359 = scmp.eq.s32.totalorder %s27, 0
      %p360 = por %p358, %p359
      %p361 = scmp.ne.s32.totalorder %s353, %s355
      %p362 = scmp.eq.s32.totalorder %s32, 3
      %p363 = por %p361, %p362
      %p364 = scmp.ne.s32.totalorder %s355, %s356
      %p365 = scmp.eq.s32.totalorder %s32, 0
      %p366 = por %p364, %p365
      %p367 = scmp.ne.s32.totalorder %s355, %s356
      %p368 = scmp.eq.s32.totalorder %s33, 3
      %p369 = por %p367, %p368
      %p371 = scmp.ne.s32.totalorder %s356, %s370
      %p372 = scmp.eq.s32.totalorder %s33, 0
      %p373 = por %p371, %p372
      %s374 = ssub.s32 %s34, %s46
      %s375 = ssub.s32 %s35, %s42
      %s376 = sor.u32 %s374, %s375
      %p377 = scmp.eq.s32.totalorder %s376, 0
      %s379 = sadd.s32 %s378, 1
      %s380 = scalar_select %p377, %s378, %s379
      %p383 = pneg %p377
      %p384 = scmp.eq.s32.totalorder %s27, 3
      %p385 = por %p383, %p384
      %p386 = scmp.ne.s32.totalorder %s378, %s381
      %p387 = scmp.eq.s32.totalorder %s27, 0
      %p388 = por %p386, %p387
      %p389 = scmp.ne.s32.totalorder %s378, %s381
      %p390 = scmp.eq.s32.totalorder %s32, 3
      %p391 = por %p389, %p390
      %p392 = scmp.ne.s32.totalorder %s381, %s382
      %p393 = scmp.eq.s32.totalorder %s32, 0
      %p394 = por %p392, %p393
      %p395 = scmp.ne.s32.totalorder %s381, %s382
      %p396 = scmp.eq.s32.totalorder %s33, 3
      %p397 = por %p395, %p396
      %p399 = scmp.ne.s32.totalorder %s382, %s398
      %p400 = scmp.eq.s32.totalorder %s33, 0
      %p401 = por %p399, %p400
      %p402 = scmp.le.s32.totalorder 1, %s27
      %p403 = scmp.lt.s32.totalorder %s27, 5
      %p404 = pnand %p402, %p403
      %p405 = pneg %p404
      // Predicated region
      $region9: #{tpu_custom_call.1} parent=5 // pred_check
        _
      $region10: #{tpu_custom_call.1} parent=5 // pred_check_branch
        %407 = sbr.rel (%p404) target = $region12
      $region11: #{tpu_custom_call.1} parent=5 // pred_region
        %s408 = ssub.s32 %s27, 1
        // Predicated region
        $region13: #{tpu_custom_call.1} parent=11 // pred_check
          %p409 = pneg %p114
        $region14: #{tpu_custom_call.1} parent=11 // pred_check_branch
          %411 = sbr.rel (%p409) target = $region16
        $region15: #{tpu_custom_call.1} parent=11 // pred_region
          _
        $region16: #{tpu_custom_call.1} parent=11 // pred_fallthru
          _
        // Predicated region
        $region17: #{tpu_custom_call.1} parent=11 // pred_check
          %p412 = pneg %p135
        $region18: #{tpu_custom_call.1} parent=11 // pred_check_branch
          %414 = sbr.rel (%p412) target = $region20
        $region19: #{tpu_custom_call.1} parent=11 // pred_region
          %s416 = ssub.s32 256, 256
          %417 = vsyncadd [#allocation5], %s416
          %s418 = sshll.u32 [#allocation4], 4
          %s419 = int_to_ptr.vmem [resolvable:$true] %s418
          %424 = dma.hbm_to_vmem [thread:$0]  %s3, 256, %s419, [#allocation5], 64, 64, 4
        $region20: #{tpu_custom_call.1} parent=11 // pred_fallthru
          _
        // Predicated region
        $region21: #{tpu_custom_call.1} parent=11 // pred_check
          %p425 = pneg %p156
        $region22: #{tpu_custom_call.1} parent=11 // pred_check_branch
          %427 = sbr.rel (%p425) target = $region24
        $region23: #{tpu_custom_call.1} parent=11 // pred_region
          %s429 = ssub.s32 256, 256
          %430 = vsyncadd [#allocation8], %s429
          %s431 = sshll.u32 [#allocation7], 4
          %s432 = int_to_ptr.vmem [resolvable:$true] %s431
          %437 = dma.hbm_to_vmem [thread:$0]  %s4, 256, %s432, [#allocation8], 64, 64, 4
        $region24: #{tpu_custom_call.1} parent=11 // pred_fallthru
          _
        // Predicated region
        $region25: #{tpu_custom_call.1} parent=11 // pred_check
          %p438 = pneg %p177
        $region26: #{tpu_custom_call.1} parent=11 // pred_check_branch
          %440 = sbr.rel (%p438) target = $region28
        $region27: #{tpu_custom_call.1} parent=11 // pred_region
          %s442 = ssub.s32 256, 256
          %443 = vsyncadd [#allocation8], %s442
          %s444 = sshll.u32 [#allocation9], 4
          %s445 = int_to_ptr.vmem [resolvable:$true] %s444
          %450 = dma.hbm_to_vmem [thread:$0]  %s5, 256, %s445, [#allocation8], 64, 64, 4
        $region28: #{tpu_custom_call.1} parent=11 // pred_fallthru
          _
        // Predicated region
        $region29: #{tpu_custom_call.1} parent=11 // pred_check
          %p451 = pneg %p198
        $region30: #{tpu_custom_call.1} parent=11 // pred_check_branch
          %453 = sbr.rel (%p451) target = $region32
        $region31: #{tpu_custom_call.1} parent=11 // pred_region
          _
        $region32: #{tpu_custom_call.1} parent=11 // pred_fallthru
          _
        // Predicated region
        $region33: #{tpu_custom_call.1} parent=11 // pred_check
          %p454 = pneg %p219
        $region34: #{tpu_custom_call.1} parent=11 // pred_check_branch
          %456 = sbr.rel (%p454) target = $region36
        $region35: #{tpu_custom_call.1} parent=11 // pred_region
          %s458 = ssub.s32 256, 256
          %459 = vsyncadd [#allocation11], %s458
          %s460 = sshll.u32 [#allocation10], 4
          %s461 = int_to_ptr.vmem [resolvable:$true] %s460
          %466 = dma.hbm_to_vmem [thread:$0]  %s7, 256, %s461, [#allocation11], 64, 64, 4
        $region36: #{tpu_custom_call.1} parent=11 // pred_fallthru
          _
        // Predicated region
        $region37: #{tpu_custom_call.1} parent=11 // pred_check
          %p467 = pneg %p240
        $region38: #{tpu_custom_call.1} parent=11 // pred_check_branch
          %469 = sbr.rel (%p467) target = $region40
        $region39: #{tpu_custom_call.1} parent=11 // pred_region
          _
        $region40: #{tpu_custom_call.1} parent=11 // pred_fallthru
          _
        // Predicated region
        $region41: #{tpu_custom_call.1} parent=11 // pred_check
          %p470 = pneg %p261
        $region42: #{tpu_custom_call.1} parent=11 // pred_check_branch
          %472 = sbr.rel (%p470) target = $region44
        $region43: #{tpu_custom_call.1} parent=11 // pred_region
          _
        $region44: #{tpu_custom_call.1} parent=11 // pred_fallthru
          _
        // Predicated region
        $region45: #{tpu_custom_call.1} parent=11 // pred_check
          %p473 = pneg %p282
        $region46: #{tpu_custom_call.1} parent=11 // pred_check_branch
          %475 = sbr.rel (%p473) target = $region48
        $region47: #{tpu_custom_call.1} parent=11 // pred_region
          _
        $region48: #{tpu_custom_call.1} parent=11 // pred_fallthru
          _
        // Predicated region
        $region49: #{tpu_custom_call.1} parent=11 // pred_check
          %p476 = pneg %p303
        $region50: #{tpu_custom_call.1} parent=11 // pred_check_branch
          %478 = sbr.rel (%p476) target = $region52
        $region51: #{tpu_custom_call.1} parent=11 // pred_region
          _
        $region52: #{tpu_custom_call.1} parent=11 // pred_fallthru
          _
        // Predicated region
        $region53: #{tpu_custom_call.1} parent=11 // pred_check
          %p479 = pneg %p324
        $region54: #{tpu_custom_call.1} parent=11 // pred_check_branch
          %481 = sbr.rel (%p479) target = $region56
        $region55: #{tpu_custom_call.1} parent=11 // pred_region
          _
        $region56: #{tpu_custom_call.1} parent=11 // pred_fallthru
          _
        // Predicated region
        $region57: #{tpu_custom_call.1} parent=11 // pred_check
          %p482 = pneg %p345
        $region58: #{tpu_custom_call.1} parent=11 // pred_check_branch
          %484 = sbr.rel (%p482) target = $region60
        $region59: #{tpu_custom_call.1} parent=11 // pred_region
          _
        $region60: #{tpu_custom_call.1} parent=11 // pred_fallthru
          _
        // Predicated region
        $region61: #{tpu_custom_call.1} parent=11 // pred_check
          %p485 = pneg %p366
        $region62: #{tpu_custom_call.1} parent=11 // pred_check_branch
          %487 = sbr.rel (%p485) target = $region64
        $region63: #{tpu_custom_call.1} parent=11 // pred_region
          _
        $region64: #{tpu_custom_call.1} parent=11 // pred_fallthru
          _
      $region12: #{tpu_custom_call.1} parent=5 // pred_fallthru
        _
      %p488 = scmp.lt.s32.totalorder %s27, 4
      // Predicated region
      $region65: #{tpu_custom_call.1} parent=5 // pred_check
        %p489 = pneg %p488
      $region66: #{tpu_custom_call.1} parent=5 // pred_check_branch
        %491 = sbr.rel (%p489) target = $region68
      $region67: #{tpu_custom_call.1} parent=5 // pred_region
        // Predicated region
        $region69: #{tpu_custom_call.1} parent=67 // pred_check
          %p492 = pneg %p59
        $region70: #{tpu_custom_call.1} parent=67 // pred_check_branch
          %494 = sbr.rel (%p492) target = $region72
        $region71: #{tpu_custom_call.1} parent=67 // pred_region
          %p495 = scmp.lt.s32.totalorder %s34, 1
          %s496 = scalar_select %p495, %s34, 1
          %s497 = smul.addr %s496, 2
          %s498 = smul.addr %s497, 8
          %s499 = scalar_lea.vmem %s0, %s498
        $region72: #{tpu_custom_call.1} parent=67 // pred_fallthru
          _
        // Predicated region
        $region73: #{tpu_custom_call.1} parent=67 // pred_check
          %p500 = pneg %p87
        $region74: #{tpu_custom_call.1} parent=67 // pred_check_branch
          %502 = sbr.rel (%p500) target = $region76
        $region75: #{tpu_custom_call.1} parent=67 // pred_region
          %p503 = scmp.lt.s32.totalorder %s34, 1
          %s504 = scalar_select %p503, %s34, 1
          %p505 = scmp.lt.s32.totalorder %s35, 1
          %s506 = scalar_select %p505, %s35, 1
          %s507 = smul.addr %s504, 2
          %s508 = sadd.s32 %s506, %s507
          %s509 = smul.addr %s508, 8
          %s510 = scalar_lea.vmem %s1, %s509
        $region76: #{tpu_custom_call.1} parent=67 // pred_fallthru
          _
      $region68: #{tpu_custom_call.1} parent=5 // pred_fallthru
        _
      %p511 = scmp.le.s32.totalorder 1, %s27
      %p512 = scmp.lt.s32.totalorder %s27, 5
      %p513 = pnand %p511, %p512
      %p514 = pneg %p513
      // Predicated region
      $region77: #{tpu_custom_call.1} parent=5 // pred_check
        _
      $region78: #{tpu_custom_call.1} parent=5 // pred_check_branch
        %516 = sbr.rel (%p513) target = $region80
      $region79: #{tpu_custom_call.1} parent=5 // pred_region
        %s517 = ssub.s32 %s27, 1
        // Predicated region
        $region81: #{tpu_custom_call.1} parent=79 // pred_check
          %p518 = pneg %p135
        $region82: #{tpu_custom_call.1} parent=79 // pred_check_branch
          %520 = sbr.rel (%p518) target = $region84
        $region83: #{tpu_custom_call.1} parent=79 // pred_region
          %521 = dma.done [#allocation5], 256
        $region84: #{tpu_custom_call.1} parent=79 // pred_fallthru
          _
        // Predicated region
        $region85: #{tpu_custom_call.1} parent=79 // pred_check
          %p522 = pneg %p156
        $region86: #{tpu_custom_call.1} parent=79 // pred_check_branch
          %524 = sbr.rel (%p522) target = $region88
        $region87: #{tpu_custom_call.1} parent=79 // pred_region
          %525 = dma.done [#allocation8], 256
        $region88: #{tpu_custom_call.1} parent=79 // pred_fallthru
          _
        // Predicated region
        $region89: #{tpu_custom_call.1} parent=79 // pred_check
          %p526 = pneg %p177
        $region90: #{tpu_custom_call.1} parent=79 // pred_check_branch
          %528 = sbr.rel (%p526) target = $region92
        $region91: #{tpu_custom_call.1} parent=79 // pred_region
          %529 = dma.done [#allocation8], 256
        $region92: #{tpu_custom_call.1} parent=79 // pred_fallthru
          _
        // Predicated region
        $region93: #{tpu_custom_call.1} parent=79 // pred_check
          %p530 = pneg %p219
        $region94: #{tpu_custom_call.1} parent=79 // pred_check_branch
          %532 = sbr.rel (%p530) target = $region96
        $region95: #{tpu_custom_call.1} parent=79 // pred_region
          %533 = dma.done [#allocation11], 256
        $region96: #{tpu_custom_call.1} parent=79 // pred_fallthru
          _
        %p534 = scmp.lt.s32.totalorder %s36, 1
        %s535 = scalar_select %p534, %s36, 1
        %s536 = smul.addr %s535, 2
        %s537 = smul.addr %s536, 8
        %s538 = scalar_lea.vmem %s0, %s537
        %p539 = pneg %p65
        %p540 = pneg %p62
        %p541 = scmp.lt.s32.totalorder %s36, 1
        %s542 = scalar_select %p541, %s36, 1
        %p543 = scmp.lt.s32.totalorder %s37, 1
        %s544 = scalar_select %p543, %s37, 1
        %s545 = smul.addr %s542, 2
        %s546 = sadd.s32 %s544, %s545
        %s547 = smul.addr %s546, 8
        %s548 = scalar_lea.vmem %s1, %s547
        %p549 = pneg %p93
        %p550 = pneg %p90
        %p551 = pneg %p114
        %p552 = pneg %p111
        %p553 = pneg %p135
        %p554 = pneg %p132
        %p555 = pneg %p156
        %p556 = pneg %p153
        %p557 = pneg %p177
        %p558 = pneg %p174
        %p559 = pneg %p198
        %p560 = pneg %p195
        %p561 = pneg %p219
        %p562 = pneg %p216
        %p563 = pneg %p240
        %p564 = pneg %p237
        %p565 = pneg %p261
        %p566 = pneg %p258
        %p567 = pneg %p282
        %p568 = pneg %p279
        %p569 = pneg %p303
        %p570 = pneg %p300
        %p571 = pneg %p324
        %p572 = pneg %p321
        %p573 = pneg %p345
        %p574 = pneg %p342
        %p575 = pneg %p366
        %p576 = pneg %p363
        %p577 = pneg %p394
        %p578 = pneg %p391
        %s579 = sand.u32 %s381, 1
        %s580 = scalar_lea.sflag [#allocation6], %s579
        %s581 = sand.u32 %s381, 1
        %s582 = smul.addr %s581, 8
        %s583 = scalar_lea.vmem [#allocation12], %s582
        %p584 = scmp.lt.s32.totalorder %s36, 1
        %s585 = scalar_select %p584, %s36, 1
        %s586 = smul.addr %s585, 2
        %s587 = smul.addr %s586, 8
        %s588 = scalar_lea.vmem %s0, %s587
        %p589 = scmp.lt.s32.totalorder %s36, 1
        %s590 = scalar_select %p589, %s36, 1
        %p591 = scmp.lt.s32.totalorder %s37, 1
        %s592 = scalar_select %p591, %s37, 1
        %s593 = smul.addr %s590, 2
        %s594 = sadd.s32 %s592, %s593
        %s595 = smul.addr %s594, 8
        %s596 = scalar_lea.vmem %s1, %s595
        %v598 = vld [vmem:[%s11] sm:$0x1]
        %v599 = vld [vmem:[%s12] sm:$0x1]
        %p600 = scmp.eq.s32.totalorder %s37, 0
        // Predicated region
        $region97: #{tpu_custom_call.1} parent=79 // pred_check
          %p601 = pneg %p600
        $region98: #{tpu_custom_call.1} parent=79 // pred_check_branch
          %603 = sbr.rel (%p601) target = $region100
        $region99: #{tpu_custom_call.1} parent=79 // pred_region
          %v604 = vld [vmem:[%s588] sm:$0xff]
          %v605 = vld [vmem:[%s588 + $0x8] sm:$0xff]
          %vm606 = vcmask 261120
          %v607 = vsel %vm606, %v604, 0.0
          %608 = vadd.xlane.f32.xlu0 %v607
          %v609 = vpop.xlane.xlu0 %608
          %v610 = vsel %vm606, %v605, 0.0
          %611 = vadd.xlane.f32.xlu0 %v610
          %v612 = vpop.xlane.xlu0 %611
          %v613 = vrcp.pop 32.0
          %v614 = vmul.f32 %v609, %v613
          %v615 = vmul.f32 %v612, %v613
          %v616 = vsub.f32 %v604, %v614
          %v617 = vsub.f32 %v605, %v615
          %v618 = vmul.f32 %v616, %v616
          %v619 = vmul.f32 %v617, %v617
          %v620 = vsel %vm606, %v618, 0.0
          %621 = vadd.xlane.f32.xlu0 %v620
          %v622 = vpop.xlane.xlu0 %621
          %v623 = vsel %vm606, %v619, 0.0
          %624 = vadd.xlane.f32.xlu0 %v623
          %v625 = vpop.xlane.xlu0 %624
          %v626 = vmul.f32 %v622, %v613
          %v627 = vmul.f32 %v625, %v613
          %v628 = vadd.f32 %v626, 1e-05
          %v629 = vadd.f32 %v627, 1e-05
          %v630 = vrsqrt.pop %v628
          %v631 = vrsqrt.pop %v629
          %v632 = vmul.f32 %v616, %v630
          %v633 = vmul.f32 %v617, %v631
          %v635 = vlaneseq
          %v636 = vshrl.u32 %v635, 7
          %v637 = vsub.s32 0, %v636
          %v638 = vrot.slane %v598, %v637
          %v640 = vmul.f32 %v632, %v638
          %v641 = vmul.f32 %v633, %v638
          %v643 = vlaneseq
          %v644 = vshrl.u32 %v643, 7
          %v645 = vsub.s32 0, %v644
          %v646 = vrot.slane %v599, %v645
          %v648 = vadd.f32 %v640, %v646
          %v649 = vadd.f32 %v641, %v646
          %v650 = vpack.c.bf16 %v649, %v648
          %v651 = vld [vmem:[#allocation4] sm:$0xf]
          %v652 = vld [vmem:[#allocation4 + $0x4] sm:$0xf]
          %v653 = vld [vmem:[#allocation4 + $0x8] sm:$0xf]
          %v654 = vld [vmem:[#allocation4 + $0xc] sm:$0xf]
          %v659 = vunpack.c.l.b16 %v651
          %v660 = vunpack.c.l.b16 %v652
          %v661 = vunpack.c.l.b16 %v653
          %v662 = vunpack.c.l.b16 %v654
          %v663 = vpack.c.b16 %v660, %v659
          %v664 = vpack.c.b16 %v662, %v661
          %v668 = vsel %vm606, %v650, 0
          %670 = vmatprep.subr.bf16.mxu0 0
          %671 = vmatpush1.bf16.msra.mxu0 %v663
          %672 = vmatprep.subr.bf16.mxu0 0
          %673 = vmatpush1.bf16.msra.mxu0 %v664
          %674 = vmatprep.subr.bf16.mxu0 0
          %675 = vmatpush1.bf16.msra.mxu0 0
          %676 = vmatprep.subr.bf16.mxu0 0
          %677 = vmatpush1.bf16.msra.mxu0 0
          %678 = vmatprep.subr.bf16.mxu0 0
          %679 = vmatpush1.bf16.msra.mxu0 0
          %680 = vmatprep.subr.bf16.mxu0 0
          %681 = vmatpush1.bf16.msra.mxu0 0
          %682 = vmatprep.subr.bf16.mxu0 0
          %683 = vmatpush1.bf16.msra.mxu0 0
          %684 = vmatprep.subr.bf16.mxu0 0
          %685 = vmatpush1.bf16.msra.mxu0 0
          %686 = vmatprep.subr.bf16.mxu0 0
          %687 = vmatpush1.bf16.msra.mxu0 0
          %688 = vmatprep.subr.bf16.mxu0 0
          %689 = vmatpush1.bf16.msra.mxu0 0
          %690 = vmatprep.subr.bf16.mxu0 0
          %691 = vmatpush1.bf16.msra.mxu0 0
          %692 = vmatprep.subr.bf16.mxu0 0
          %693 = vmatpush1.bf16.msra.mxu0 0
          %694 = vmatprep.subr.bf16.mxu0 0
          %695 = vmatpush1.bf16.msra.mxu0 0
          %696 = vmatprep.subr.bf16.mxu0 0
          %697 = vmatpush1.bf16.msra.mxu0 0
          %698 = vmatprep.subr.bf16.mxu0 0
          %699 = vmatpush1.bf16.msra.mxu0 0
          %700 = vmatprep.subr.bf16.mxu0 0
          %701 = vmatpush1.bf16.msra.mxu0 0
          %702 = vmatprep.mubr.bf16.mxu0 0
          %703 = vmatmul.mubr.bf16.gmra.mrb[0].mxu0 %v668
          %v704 = vpop.f32.mrb[0].mxu0
          %v705 = vadd.f32 0.0, %v704
          %v706 = vpop.f32.mrb[0].mxu0
          %v707 = vpop.f32.mrb[0].mxu0
          %v708 = vadd.f32 0.0, %v707
          %v709 = vpop.f32.mrb[0].mxu0
          %710 = vdwg.mxu0
          %v711 = vld [vmem:[#allocation7] sm:$0xf]
          %v712 = vld [vmem:[#allocation7 + $0x4] sm:$0xf]
          %v713 = vld [vmem:[#allocation7 + $0x8] sm:$0xf]
          %v714 = vld [vmem:[#allocation7 + $0xc] sm:$0xf]
          %v719 = vunpack.c.l.b16 %v711
          %v720 = vunpack.c.l.b16 %v712
          %v721 = vunpack.c.l.b16 %v713
          %v722 = vunpack.c.l.b16 %v714
          %v723 = vpack.c.b16 %v720, %v719
          %v724 = vpack.c.b16 %v722, %v721
          %727 = vmatprep.subr.bf16.mxu0 0
          %728 = vmatpush1.bf16.msra.mxu0 %v723
          %729 = vmatprep.subr.bf16.mxu0 0
          %730 = vmatpush1.bf16.msra.mxu0 %v724
          %731 = vmatprep.subr.bf16.mxu0 0
          %732 = vmatpush1.bf16.msra.mxu0 0
          %733 = vmatprep.subr.bf16.mxu0 0
          %734 = vmatpush1.bf16.msra.mxu0 0
          %735 = vmatprep.subr.bf16.mxu0 0
          %736 = vmatpush1.bf16.msra.mxu0 0
          %737 = vmatprep.subr.bf16.mxu0 0
          %738 = vmatpush1.bf16.msra.mxu0 0
          %739 = vmatprep.subr.bf16.mxu0 0
          %740 = vmatpush1.bf16.msra.mxu0 0
          %741 = vmatprep.subr.bf16.mxu0 0
          %742 = vmatpush1.bf16.msra.mxu0 0
          %743 = vmatprep.subr.bf16.mxu0 0
          %744 = vmatpush1.bf16.msra.mxu0 0
          %745 = vmatprep.subr.bf16.mxu0 0
          %746 = vmatpush1.bf16.msra.mxu0 0
          %747 = vmatprep.subr.bf16.mxu0 0
          %748 = vmatpush1.bf16.msra.mxu0 0
          %749 = vmatprep.subr.bf16.mxu0 0
          %750 = vmatpush1.bf16.msra.mxu0 0
          %751 = vmatprep.subr.bf16.mxu0 0
          %752 = vmatpush1.bf16.msra.mxu0 0
          %753 = vmatprep.subr.bf16.mxu0 0
          %754 = vmatpush1.bf16.msra.mxu0 0
          %755 = vmatprep.subr.bf16.mxu0 0
          %756 = vmatpush1.bf16.msra.mxu0 0
          %757 = vmatprep.subr.bf16.mxu0 0
          %758 = vmatpush1.bf16.msra.mxu0 0
          %759 = vmatprep.mubr.bf16.mxu0 0
          %760 = vmatmul.mubr.bf16.gmra.mrb[0].mxu0 %v668
          %v761 = vpop.f32.mrb[0].mxu0
          %v762 = vadd.f32 0.0, %v761
          %v763 = vpop.f32.mrb[0].mxu0
          %v764 = vpop.f32.mrb[0].mxu0
          %v765 = vadd.f32 0.0, %v764
          %v766 = vpop.f32.mrb[0].mxu0
          %767 = vdwg.mxu0
          %768 = vxpose.xlu0.b32.start [1/16] %v705, 128
          %769 = vxpose.xlu0.b32.cont [2/16] %v708, 128
          %770 = vxpose.xlu0.b32.cont [3/16] 0.0, 128
          %771 = vxpose.xlu0.b32.cont [4/16] 0.0, 128
          %772 = vxpose.xlu0.b32.cont [5/16] 0.0, 128
          %773 = vxpose.xlu0.b32.cont [6/16] 0.0, 128
          %774 = vxpose.xlu0.b32.cont [7/16] 0.0, 128
          %775 = vxpose.xlu0.b32.cont [8/16] 0.0, 128
          %776 = vxpose.xlu0.b32.cont [9/16] 0.0, 128
          %777 = vxpose.xlu0.b32.cont [10/16] 0.0, 128
          %778 = vxpose.xlu0.b32.cont [11/16] 0.0, 128
          %779 = vxpose.xlu0.b32.cont [12/16] 0.0, 128
          %780 = vxpose.xlu0.b32.cont [13/16] 0.0, 128
          %781 = vxpose.xlu0.b32.cont [14/16] 0.0, 128
          %782 = vxpose.xlu0.b32.cont [15/16] 0.0, 128
          %783 = vxpose.xlu0.b32.end [16/16] 0.0, 128
          %v784 = vpop.trf.xlu0
          %v785 = vpop.trf.xlu0
          %v786 = vpop.trf.xlu0
          %v787 = vpop.trf.xlu0
          %v788 = vpop.trf.xlu0
          %v789 = vpop.trf.xlu0
          %v790 = vpop.trf.xlu0
          %v791 = vpop.trf.xlu0
          %v792 = vpop.trf.xlu0
          %v793 = vpop.trf.xlu0
          %v794 = vpop.trf.xlu0
          %v795 = vpop.trf.xlu0
          %v796 = vpop.trf.xlu0
          %v797 = vpop.trf.xlu0
          %v798 = vpop.trf.xlu0
          %v799 = vpop.trf.xlu0
          %v800 = vpack.c.bf16 %v784, %v784
          %vm801 = vcmask 125952
          %802 = vst.msk [vmem:[#allocation2] sm:$0xf] %vm801, %v800
          %v803 = vpack.c.bf16 %v765, %v762
          %vm804 = vcmask 64512
          %805 = vst.msk [vmem:[#allocation3] sm:$0xff] %vm804, %v803
          %808 = vrot.lane.b32.xlu0 %v705, 120
          %v809 = vpop.permute.xlu0 %808
          %810 = vrot.lane.b32.xlu0 %v708, 120
          %v811 = vpop.permute.xlu0 %810
          %814 = vxpose.xlu0.b32.start [1/16] %v809, 128
          %815 = vxpose.xlu0.b32.cont [2/16] %v811, 128
          %816 = vxpose.xlu0.b32.cont [3/16] 0.0, 128
          %817 = vxpose.xlu0.b32.cont [4/16] 0.0, 128
          %818 = vxpose.xlu0.b32.cont [5/16] 0.0, 128
          %819 = vxpose.xlu0.b32.cont [6/16] 0.0, 128
          %820 = vxpose.xlu0.b32.cont [7/16] 0.0, 128
          %821 = vxpose.xlu0.b32.cont [8/16] 0.0, 128
          %822 = vxpose.xlu0.b32.cont [9/16] 0.0, 128
          %823 = vxpose.xlu0.b32.cont [10/16] 0.0, 128
          %824 = vxpose.xlu0.b32.cont [11/16] 0.0, 128
          %825 = vxpose.xlu0.b32.cont [12/16] 0.0, 128
          %826 = vxpose.xlu0.b32.cont [13/16] 0.0, 128
          %827 = vxpose.xlu0.b32.cont [14/16] 0.0, 128
          %828 = vxpose.xlu0.b32.cont [15/16] 0.0, 128
          %829 = vxpose.xlu0.b32.end [16/16] 0.0, 128
          %v830 = vpop.trf.xlu0
          %v831 = vpop.trf.xlu0
          %v832 = vpop.trf.xlu0
          %v833 = vpop.trf.xlu0
          %v834 = vpop.trf.xlu0
          %v835 = vpop.trf.xlu0
          %v836 = vpop.trf.xlu0
          %v837 = vpop.trf.xlu0
          %v838 = vpop.trf.xlu0
          %v839 = vpop.trf.xlu0
          %v840 = vpop.trf.xlu0
          %v841 = vpop.trf.xlu0
          %v842 = vpop.trf.xlu0
          %v843 = vpop.trf.xlu0
          %v844 = vpop.trf.xlu0
          %v845 = vpop.trf.xlu0
          %v846 = vpack.c.bf16 %v830, %v830
          %s847 = scalar_lea.vmem [#allocation2], 4
          %848 = vst.msk [vmem:[%s847] sm:$0xf] %vm801, %v846
          %850 = vrot.lane.b32.xlu0 %v803, 120
          %v851 = vpop.permute.xlu0 %850
          %s853 = scalar_lea.vmem [#allocation3], 8
          %854 = vst.msk [vmem:[%s853] sm:$0xff] %vm804, %v851
          %855 = vrot.lane.b32.xlu0 %v705, 112
          %v856 = vpop.permute.xlu0 %855
          %857 = vrot.lane.b32.xlu0 %v708, 112
          %v858 = vpop.permute.xlu0 %857
          %861 = vxpose.xlu0.b32.start [1/16] %v856, 128
          %862 = vxpose.xlu0.b32.cont [2/16] %v858, 128
          %863 = vxpose.xlu0.b32.cont [3/16] 0.0, 128
          %864 = vxpose.xlu0.b32.cont [4/16] 0.0, 128
          %865 = vxpose.xlu0.b32.cont [5/16] 0.0, 128
          %866 = vxpose.xlu0.b32.cont [6/16] 0.0, 128
          %867 = vxpose.xlu0.b32.cont [7/16] 0.0, 128
          %868 = vxpose.xlu0.b32.cont [8/16] 0.0, 128
          %869 = vxpose.xlu0.b32.cont [9/16] 0.0, 128
          %870 = vxpose.xlu0.b32.cont [10/16] 0.0, 128
          %871 = vxpose.xlu0.b32.cont [11/16] 0.0, 128
          %872 = vxpose.xlu0.b32.cont [12/16] 0.0, 128
          %873 = vxpose.xlu0.b32.cont [13/16] 0.0, 128
          %874 = vxpose.xlu0.b32.cont [14/16] 0.0, 128
          %875 = vxpose.xlu0.b32.cont [15/16] 0.0, 128
          %876 = vxpose.xlu0.b32.end [16/16] 0.0, 128
          %v877 = vpop.trf.xlu0
          %v878 = vpop.trf.xlu0
          %v879 = vpop.trf.xlu0
          %v880 = vpop.trf.xlu0
          %v881 = vpop.trf.xlu0
          %v882 = vpop.trf.xlu0
          %v883 = vpop.trf.xlu0
          %v884 = vpop.trf.xlu0
          %v885 = vpop.trf.xlu0
          %v886 = vpop.trf.xlu0
          %v887 = vpop.trf.xlu0
          %v888 = vpop.trf.xlu0
          %v889 = vpop.trf.xlu0
          %v890 = vpop.trf.xlu0
          %v891 = vpop.trf.xlu0
          %v892 = vpop.trf.xlu0
          %v893 = vpack.c.bf16 %v877, %v877
          %s894 = scalar_lea.vmem [#allocation2], 8
          %895 = vst.msk [vmem:[%s894] sm:$0xf] %vm801, %v893
          %896 = vrot.lane.b32.xlu0 %v803, 112
          %v897 = vpop.permute.xlu0 %896
          %s899 = scalar_lea.vmem [#allocation3], 16
          %900 = vst.msk [vmem:[%s899] sm:$0xff] %vm804, %v897
          %901 = vrot.lane.b32.xlu0 %v705, 104
          %v902 = vpop.permute.xlu0 %901
          %903 = vrot.lane.b32.xlu0 %v708, 104
          %v904 = vpop.permute.xlu0 %903
          %907 = vxpose.xlu0.b32.start [1/16] %v902, 128
          %908 = vxpose.xlu0.b32.cont [2/16] %v904, 128
          %909 = vxpose.xlu0.b32.cont [3/16] 0.0, 128
          %910 = vxpose.xlu0.b32.cont [4/16] 0.0, 128
          %911 = vxpose.xlu0.b32.cont [5/16] 0.0, 128
          %912 = vxpose.xlu0.b32.cont [6/16] 0.0, 128
          %913 = vxpose.xlu0.b32.cont [7/16] 0.0, 128
          %914 = vxpose.xlu0.b32.cont [8/16] 0.0, 128
          %915 = vxpose.xlu0.b32.cont [9/16] 0.0, 128
          %916 = vxpose.xlu0.b32.cont [10/16] 0.0, 128
          %917 = vxpose.xlu0.b32.cont [11/16] 0.0, 128
          %918 = vxpose.xlu0.b32.cont [12/16] 0.0, 128
          %919 = vxpose.xlu0.b32.cont [13/16] 0.0, 128
          %920 = vxpose.xlu0.b32.cont [14/16] 0.0, 128
          %921 = vxpose.xlu0.b32.cont [15/16] 0.0, 128
          %922 = vxpose.xlu0.b32.end [16/16] 0.0, 128
          %v923 = vpop.trf.xlu0
          %v924 = vpop.trf.xlu0
          %v925 = vpop.trf.xlu0
          %v926 = vpop.trf.xlu0
          %v927 = vpop.trf.xlu0
          %v928 = vpop.trf.xlu0
          %v929 = vpop.trf.xlu0
          %v930 = vpop.trf.xlu0
          %v931 = vpop.trf.xlu0
          %v932 = vpop.trf.xlu0
          %v933 = vpop.trf.xlu0
          %v934 = vpop.trf.xlu0
          %v935 = vpop.trf.xlu0
          %v936 = vpop.trf.xlu0
          %v937 = vpop.trf.xlu0
          %v938 = vpop.trf.xlu0
          %v939 = vpack.c.bf16 %v923, %v923
          %s940 = scalar_lea.vmem [#allocation2], 12
          %941 = vst.msk [vmem:[%s940] sm:$0xf] %vm801, %v939
          %942 = vrot.lane.b32.xlu0 %v803, 104
          %v943 = vpop.permute.xlu0 %942
          %s945 = scalar_lea.vmem [#allocation3], 24
          %946 = vst.msk [vmem:[%s945] sm:$0xff] %vm804, %v943
        $region100: #{tpu_custom_call.1} parent=79 // pred_fallthru
          _
        %v947 = vld [vmem:[%s596] sm:$0xff]
        %vm948 = vcmask 261120
        %v949 = vsel %vm948, %v947, 0.0
        %950 = vadd.xlane.f32.xlu0 %v949
        %v951 = vpop.xlane.xlu0 %950
        %v952 = vrcp.pop 32.0
        %v953 = vmul.f32 %v951, %v952
        %v954 = vsub.f32 %v947, %v953
        %v955 = vmul.f32 %v954, %v954
        %v956 = vsel %vm948, %v955, 0.0
        %957 = vadd.xlane.f32.xlu0 %v956
        %v958 = vpop.xlane.xlu0 %957
        %v959 = vmul.f32 %v958, %v952
        %v960 = vadd.f32 %v959, 1e-05
        %v961 = vrsqrt.pop %v960
        %v962 = vmul.f32 %v954, %v961
        %v964 = vlaneseq
        %v965 = vshrl.u32 %v964, 7
        %v966 = vsub.s32 0, %v965
        %v967 = vrot.slane %v598, %v966
        %v969 = vmul.f32 %v962, %v967
        %v971 = vlaneseq
        %v972 = vshrl.u32 %v971, 7
        %v973 = vsub.s32 0, %v972
        %v974 = vrot.slane %v599, %v973
        %v976 = vadd.f32 %v969, %v974
        %v977 = vpack.c.bf16 %v976, %v976
        %v978 = vld [vmem:[%s2] sm:$0xf]
        %v979 = vld [vmem:[%s2 + $0x4] sm:$0xf]
        %v980 = vld [vmem:[%s2 + $0x8] sm:$0xf]
        %v981 = vld [vmem:[%s2 + $0xc] sm:$0xf]
        %v986 = vunpack.c.l.b16 %v978
        %v987 = vunpack.c.l.b16 %v979
        %v988 = vunpack.c.l.b16 %v980
        %v989 = vunpack.c.l.b16 %v981
        %v990 = vpack.c.b16 %v987, %v986
        %v991 = vpack.c.b16 %v989, %v988
        %v995 = vsel %vm948, %v977, 0
        %997 = vmatprep.subr.bf16.mxu0 0
        %998 = vmatpush1.bf16.msra.mxu0 %v990
        %999 = vmatprep.subr.bf16.mxu0 0
        %1000 = vmatpush1.bf16.msra.mxu0 %v991
        %1001 = vmatprep.subr.bf16.mxu0 0
        %1002 = vmatpush1.bf16.msra.mxu0 0
        %1003 = vmatprep.subr.bf16.mxu0 0
        %1004 = vmatpush1.bf16.msra.mxu0 0
        %1005 = vmatprep.subr.bf16.mxu0 0
        %1006 = vmatpush1.bf16.msra.mxu0 0
        %1007 = vmatprep.subr.bf16.mxu0 0
        %1008 = vmatpush1.bf16.msra.mxu0 0
        %1009 = vmatprep.subr.bf16.mxu0 0
        %1010 = vmatpush1.bf16.msra.mxu0 0
        %1011 = vmatprep.subr.bf16.mxu0 0
        %1012 = vmatpush1.bf16.msra.mxu0 0
        %1013 = vmatprep.subr.bf16.mxu0 0
        %1014 = vmatpush1.bf16.msra.mxu0 0
        %1015 = vmatprep.subr.bf16.mxu0 0
        %1016 = vmatpush1.bf16.msra.mxu0 0
        %1017 = vmatprep.subr.bf16.mxu0 0
        %1018 = vmatpush1.bf16.msra.mxu0 0
        %1019 = vmatprep.subr.bf16.mxu0 0
        %1020 = vmatpush1.bf16.msra.mxu0 0
        %1021 = vmatprep.subr.bf16.mxu0 0
        %1022 = vmatpush1.bf16.msra.mxu0 0
        %1023 = vmatprep.subr.bf16.mxu0 0
        %1024 = vmatpush1.bf16.msra.mxu0 0
        %1025 = vmatprep.subr.bf16.mxu0 0
        %1026 = vmatpush1.bf16.msra.mxu0 0
        %1027 = vmatprep.subr.bf16.mxu0 0
        %1028 = vmatpush1.bf16.msra.mxu0 0
        %1029 = vmatprep.mubr.bf16.mxu0 0
        %1030 = vmatmul.mubr.bf16.gmra.mrb[0].mxu0 %v995
        %v1031 = vpop.f32.mrb[0].mxu0
        %v1032 = vadd.f32 0.0, %v1031
        %v1033 = vpop.f32.mrb[0].mxu0
        %v1034 = vpop.f32.mrb[0].mxu0
        %v1035 = vpop.f32.mrb[0].mxu0
        %1036 = vdwg.mxu0
        %1038 = vrot.lane.b32.xlu0 %v1032, 120
        %v1039 = vpop.permute.xlu0 %1038
        %1041 = vrot.lane.b32.xlu0 %v1032, 112
        %v1042 = vpop.permute.xlu0 %1041
        %1044 = vrot.lane.b32.xlu0 %v1032, 104
        %v1045 = vpop.permute.xlu0 %1044
        %v1047 = vpack.c.bf16 %v1032, %v1032
        %v1048 = vpack.c.bf16 %v1039, %v1039
        %v1049 = vpack.c.bf16 %v1042, %v1042
        %v1050 = vpack.c.bf16 %v1045, %v1045
        %v1051 = vld [vmem:[#allocation2] sm:$0xf]
        %v1052 = vld [vmem:[#allocation2 + $0x4] sm:$0xf]
        %v1053 = vld [vmem:[#allocation2 + $0x8] sm:$0xf]
        %v1054 = vld [vmem:[#allocation2 + $0xc] sm:$0xf]
        %vm1055 = vcmask 64512
        %v1057 = vsel %vm1055, %v1047, 0
        %vm1059 = vcmask 1043456
        %v1061 = vsel %vm1059, %v1051, 0
        %1063 = vmatprep.subr.bf16.mxu0 0
        %1064 = vmatpush1.bf16.msra.mxu0 %v1061
        %1065 = vmatprep.subr.bf16.mxu0 0
        %1066 = vmatpush1.bf16.msra.mxu0 0
        %1067 = vmatprep.subr.bf16.mxu0 0
        %1068 = vmatpush1.bf16.msra.mxu0 0
        %1069 = vmatprep.subr.bf16.mxu0 0
        %1070 = vmatpush1.bf16.msra.mxu0 0
        %1071 = vmatprep.subr.bf16.mxu0 0
        %1072 = vmatpush1.bf16.msra.mxu0 0
        %1073 = vmatprep.subr.bf16.mxu0 0
        %1074 = vmatpush1.bf16.msra.mxu0 0
        %1075 = vmatprep.subr.bf16.mxu0 0
        %1076 = vmatpush1.bf16.msra.mxu0 0
        %1077 = vmatprep.subr.bf16.mxu0 0
        %1078 = vmatpush1.bf16.msra.mxu0 0
        %1079 = vmatprep.subr.bf16.mxu0 0
        %1080 = vmatpush1.bf16.msra.mxu0 0
        %1081 = vmatprep.subr.bf16.mxu0 0
        %1082 = vmatpush1.bf16.msra.mxu0 0
        %1083 = vmatprep.subr.bf16.mxu0 0
        %1084 = vmatpush1.bf16.msra.mxu0 0
        %1085 = vmatprep.subr.bf16.mxu0 0
        %1086 = vmatpush1.bf16.msra.mxu0 0
        %1087 = vmatprep.subr.bf16.mxu0 0
        %1088 = vmatpush1.bf16.msra.mxu0 0
        %1089 = vmatprep.subr.bf16.mxu0 0
        %1090 = vmatpush1.bf16.msra.mxu0 0
        %1091 = vmatprep.subr.bf16.mxu0 0
        %1092 = vmatpush1.bf16.msra.mxu0 0
        %1093 = vmatprep.subr.bf16.mxu0 0
        %1094 = vmatpush1.bf16.msra.mxu0 0
        %1095 = vmatprep.mubr.bf16.mxu0 0
        %1096 = vmatmul.mubr.bf16.gmra.mrb[0].mxu0 %v1057
        %v1097 = vpop.f32.mrb[0].mxu0
        %v1098 = vadd.f32 0.0, %v1097
        %v1099 = vpop.f32.mrb[0].mxu0
        %v1100 = vpop.f32.mrb[0].mxu0
        %v1101 = vpop.f32.mrb[0].mxu0
        %1102 = vdwg.mxu0
        %v1104 = vsel %vm1055, %v1048, 0
        %v1107 = vsel %vm1059, %v1052, 0
        %1109 = vmatprep.subr.bf16.mxu0 0
        %1110 = vmatpush1.bf16.msra.mxu0 %v1107
        %1111 = vmatprep.subr.bf16.mxu0 0
        %1112 = vmatpush1.bf16.msra.mxu0 0
        %1113 = vmatprep.subr.bf16.mxu0 0
        %1114 = vmatpush1.bf16.msra.mxu0 0
        %1115 = vmatprep.subr.bf16.mxu0 0
        %1116 = vmatpush1.bf16.msra.mxu0 0
        %1117 = vmatprep.subr.bf16.mxu0 0
        %1118 = vmatpush1.bf16.msra.mxu0 0
        %1119 = vmatprep.subr.bf16.mxu0 0
        %1120 = vmatpush1.bf16.msra.mxu0 0
        %1121 = vmatprep.subr.bf16.mxu0 0
        %1122 = vmatpush1.bf16.msra.mxu0 0
        %1123 = vmatprep.subr.bf16.mxu0 0
        %1124 = vmatpush1.bf16.msra.mxu0 0
        %1125 = vmatprep.subr.bf16.mxu0 0
        %1126 = vmatpush1.bf16.msra.mxu0 0
        %1127 = vmatprep.subr.bf16.mxu0 0
        %1128 = vmatpush1.bf16.msra.mxu0 0
        %1129 = vmatprep.subr.bf16.mxu0 0
        %1130 = vmatpush1.bf16.msra.mxu0 0
        %1131 = vmatprep.subr.bf16.mxu0 0
        %1132 = vmatpush1.bf16.msra.mxu0 0
        %1133 = vmatprep.subr.bf16.mxu0 0
        %1134 = vmatpush1.bf16.msra.mxu0 0
        %1135 = vmatprep.subr.bf16.mxu0 0
        %1136 = vmatpush1.bf16.msra.mxu0 0
        %1137 = vmatprep.subr.bf16.mxu0 0
        %1138 = vmatpush1.bf16.msra.mxu0 0
        %1139 = vmatprep.subr.bf16.mxu0 0
        %1140 = vmatpush1.bf16.msra.mxu0 0
        %1141 = vmatprep.mubr.bf16.mxu0 0
        %1142 = vmatmul.mubr.bf16.gmra.mrb[0].mxu0 %v1104
        %v1143 = vpop.f32.mrb[0].mxu0
        %v1144 = vadd.f32 0.0, %v1143
        %v1145 = vpop.f32.mrb[0].mxu0
        %v1146 = vpop.f32.mrb[0].mxu0
        %v1147 = vpop.f32.mrb[0].mxu0
        %1148 = vdwg.mxu0
        %v1150 = vsel %vm1055, %v1049, 0
        %v1153 = vsel %vm1059, %v1053, 0
        %1155 = vmatprep.subr.bf16.mxu0 0
        %1156 = vmatpush1.bf16.msra.mxu0 %v1153
        %1157 = vmatprep.subr.bf16.mxu0 0
        %1158 = vmatpush1.bf16.msra.mxu0 0
        %1159 = vmatprep.subr.bf16.mxu0 0
        %1160 = vmatpush1.bf16.msra.mxu0 0
        %1161 = vmatprep.subr.bf16.mxu0 0
        %1162 = vmatpush1.bf16.msra.mxu0 0
        %1163 = vmatprep.subr.bf16.mxu0 0
        %1164 = vmatpush1.bf16.msra.mxu0 0
        %1165 = vmatprep.subr.bf16.mxu0 0
        %1166 = vmatpush1.bf16.msra.mxu0 0
        %1167 = vmatprep.subr.bf16.mxu0 0
        %1168 = vmatpush1.bf16.msra.mxu0 0
        %1169 = vmatprep.subr.bf16.mxu0 0
        %1170 = vmatpush1.bf16.msra.mxu0 0
        %1171 = vmatprep.subr.bf16.mxu0 0
        %1172 = vmatpush1.bf16.msra.mxu0 0
        %1173 = vmatprep.subr.bf16.mxu0 0
        %1174 = vmatpush1.bf16.msra.mxu0 0
        %1175 = vmatprep.subr.bf16.mxu0 0
        %1176 = vmatpush1.bf16.msra.mxu0 0
        %1177 = vmatprep.subr.bf16.mxu0 0
        %1178 = vmatpush1.bf16.msra.mxu0 0
        %1179 = vmatprep.subr.bf16.mxu0 0
        %1180 = vmatpush1.bf16.msra.mxu0 0
        %1181 = vmatprep.subr.bf16.mxu0 0
        %1182 = vmatpush1.bf16.msra.mxu0 0
        %1183 = vmatprep.subr.bf16.mxu0 0
        %1184 = vmatpush1.bf16.msra.mxu0 0
        %1185 = vmatprep.subr.bf16.mxu0 0
        %1186 = vmatpush1.bf16.msra.mxu0 0
        %1187 = vmatprep.mubr.bf16.mxu0 0
        %1188 = vmatmul.mubr.bf16.gmra.mrb[0].mxu0 %v1150
        %v1189 = vpop.f32.mrb[0].mxu0
        %v1190 = vadd.f32 0.0, %v1189
        %v1191 = vpop.f32.mrb[0].mxu0
        %v1192 = vpop.f32.mrb[0].mxu0
        %v1193 = vpop.f32.mrb[0].mxu0
        %1194 = vdwg.mxu0
        %v1196 = vsel %vm1055, %v1050, 0
        %v1199 = vsel %vm1059, %v1054, 0
        %1201 = vmatprep.subr.bf16.mxu0 0
        %1202 = vmatpush1.bf16.msra.mxu0 %v1199
        %1203 = vmatprep.subr.bf16.mxu0 0
        %1204 = vmatpush1.bf16.msra.mxu0 0
        %1205 = vmatprep.subr.bf16.mxu0 0
        %1206 = vmatpush1.bf16.msra.mxu0 0
        %1207 = vmatprep.subr.bf16.mxu0 0
        %1208 = vmatpush1.bf16.msra.mxu0 0
        %1209 = vmatprep.subr.bf16.mxu0 0
        %1210 = vmatpush1.bf16.msra.mxu0 0
        %1211 = vmatprep.subr.bf16.mxu0 0
        %1212 = vmatpush1.bf16.msra.mxu0 0
        %1213 = vmatprep.subr.bf16.mxu0 0
        %1214 = vmatpush1.bf16.msra.mxu0 0
        %1215 = vmatprep.subr.bf16.mxu0 0
        %1216 = vmatpush1.bf16.msra.mxu0 0
        %1217 = vmatprep.subr.bf16.mxu0 0
        %1218 = vmatpush1.bf16.msra.mxu0 0
        %1219 = vmatprep.subr.bf16.mxu0 0
        %1220 = vmatpush1.bf16.msra.mxu0 0
        %1221 = vmatprep.subr.bf16.mxu0 0
        %1222 = vmatpush1.bf16.msra.mxu0 0
        %1223 = vmatprep.subr.bf16.mxu0 0
        %1224 = vmatpush1.bf16.msra.mxu0 0
        %1225 = vmatprep.subr.bf16.mxu0 0
        %1226 = vmatpush1.bf16.msra.mxu0 0
        %1227 = vmatprep.subr.bf16.mxu0 0
        %1228 = vmatpush1.bf16.msra.mxu0 0
        %1229 = vmatprep.subr.bf16.mxu0 0
        %1230 = vmatpush1.bf16.msra.mxu0 0
        %1231 = vmatprep.subr.bf16.mxu0 0
        %1232 = vmatpush1.bf16.msra.mxu0 0
        %1233 = vmatprep.mubr.bf16.mxu0 0
        %1234 = vmatmul.mubr.bf16.gmra.mrb[0].mxu0 %v1196
        %v1235 = vpop.f32.mrb[0].mxu0
        %v1236 = vadd.f32 0.0, %v1235
        %v1237 = vpop.f32.mrb[0].mxu0
        %v1238 = vpop.f32.mrb[0].mxu0
        %v1239 = vpop.f32.mrb[0].mxu0
        %1240 = vdwg.mxu0
        %v1241 = vmul.f32 %v1098, 0.17677669
        %v1242 = vmul.f32 %v1144, 0.17677669
        %v1243 = vmul.f32 %v1190, 0.17677669
        %v1244 = vmul.f32 %v1236, 0.17677669
        %s1245 = smul.u32 %s37, 8
        %v1246 = vlaneseq
        %v1247 = vshrl.u32 %v1246, 7
        %v1248 = vstv %s1245
        %v1249 = vadd.s32 %v1248, %v1247
        %v1250 = vlaneseq
        %v1251 = vand.u32 %v1250, 127
        %vm1252 = vcmp.ge.s32.totalorder %v1249, %v1251
        %v1253 = vsel %vm1252, 1, 0
        %vm1254 = vcmp.eq.s32.totalorder %v1253, 1
        %v1255 = vsel %vm1254, %v1241, -1e+30
        %v1256 = vsel %vm1254, %v1242, -1e+30
        %v1257 = vsel %vm1254, %v1243, -1e+30
        %v1258 = vsel %vm1254, %v1244, -1e+30
        %vm1259 = vcmask 130048
        %v1260 = vsel %vm1259, %v1255, -inf
        %1261 = vmax.xlane.f32.xlu0 %v1260
        %v1262 = vpop.xlane.xlu0 %1261
        %v1263 = vsel %vm1259, %v1256, -inf
        %1264 = vmax.xlane.f32.xlu0 %v1263
        %v1265 = vpop.xlane.xlu0 %1264
        %v1266 = vsel %vm1259, %v1257, -inf
        %1267 = vmax.xlane.f32.xlu0 %v1266
        %v1268 = vpop.xlane.xlu0 %1267
        %v1269 = vsel %vm1259, %v1258, -inf
        %1270 = vmax.xlane.f32.xlu0 %v1269
        %v1271 = vpop.xlane.xlu0 %1270
        %v1272 = vsub.f32 %v1255, %v1262
        %v1273 = vsub.f32 %v1256, %v1265
        %v1274 = vsub.f32 %v1257, %v1268
        %v1275 = vsub.f32 %v1258, %v1271
        %v1276 = vmul.f32 %v1272, 1.442695
        %v1277 = vpow.pop %v1276
        %v1278 = vmul.f32 %v1273, 1.442695
        %v1279 = vpow.pop %v1278
        %v1280 = vmul.f32 %v1274, 1.442695
        %v1281 = vpow.pop %v1280
        %v1282 = vmul.f32 %v1275, 1.442695
        %v1283 = vpow.pop %v1282
        %v1284 = vsel %vm1259, %v1277, 0.0
        %1285 = vadd.xlane.f32.xlu0 %v1284
        %v1286 = vpop.xlane.xlu0 %1285
        %v1287 = vsel %vm1259, %v1279, 0.0
        %1288 = vadd.xlane.f32.xlu0 %v1287
        %v1289 = vpop.xlane.xlu0 %1288
        %v1290 = vsel %vm1259, %v1281, 0.0
        %1291 = vadd.xlane.f32.xlu0 %v1290
        %v1292 = vpop.xlane.xlu0 %1291
        %v1293 = vsel %vm1259, %v1283, 0.0
        %1294 = vadd.xlane.f32.xlu0 %v1293
        %v1295 = vpop.xlane.xlu0 %1294
        %v1296 = vpack.c.bf16 %v1277, %v1277
        %v1297 = vpack.c.bf16 %v1279, %v1279
        %v1298 = vpack.c.bf16 %v1281, %v1281
        %v1299 = vpack.c.bf16 %v1283, %v1283
        %v1300 = vld [vmem:[#allocation3] sm:$0xff]
        %v1301 = vld [vmem:[#allocation3 + $0x8] sm:$0xff]
        %v1302 = vld [vmem:[#allocation3 + $0x10] sm:$0xff]
        %v1303 = vld [vmem:[#allocation3 + $0x18] sm:$0xff]
        %v1305 = vsel %vm1259, %v1296, 0
        %1307 = vmatprep.subr.bf16.mxu0 0
        %1308 = vmatpush1.bf16.msra.mxu0 %v1300
        %1309 = vmatprep.subr.bf16.mxu0 0
        %1310 = vmatpush1.bf16.msra.mxu0 0
        %1311 = vmatprep.subr.bf16.mxu0 0
        %1312 = vmatpush1.bf16.msra.mxu0 0
        %1313 = vmatprep.subr.bf16.mxu0 0
        %1314 = vmatpush1.bf16.msra.mxu0 0
        %1315 = vmatprep.subr.bf16.mxu0 0
        %1316 = vmatpush1.bf16.msra.mxu0 0
        %1317 = vmatprep.subr.bf16.mxu0 0
        %1318 = vmatpush1.bf16.msra.mxu0 0
        %1319 = vmatprep.subr.bf16.mxu0 0
        %1320 = vmatpush1.bf16.msra.mxu0 0
        %1321 = vmatprep.subr.bf16.mxu0 0
        %1322 = vmatpush1.bf16.msra.mxu0 0
        %1323 = vmatprep.subr.bf16.mxu0 0
        %1324 = vmatpush1.bf16.msra.mxu0 0
        %1325 = vmatprep.subr.bf16.mxu0 0
        %1326 = vmatpush1.bf16.msra.mxu0 0
        %1327 = vmatprep.subr.bf16.mxu0 0
        %1328 = vmatpush1.bf16.msra.mxu0 0
        %1329 = vmatprep.subr.bf16.mxu0 0
        %1330 = vmatpush1.bf16.msra.mxu0 0
        %1331 = vmatprep.subr.bf16.mxu0 0
        %1332 = vmatpush1.bf16.msra.mxu0 0
        %1333 = vmatprep.subr.bf16.mxu0 0
        %1334 = vmatpush1.bf16.msra.mxu0 0
        %1335 = vmatprep.subr.bf16.mxu0 0
        %1336 = vmatpush1.bf16.msra.mxu0 0
        %1337 = vmatprep.subr.bf16.mxu0 0
        %1338 = vmatpush1.bf16.msra.mxu0 0
        %1339 = vmatprep.mubr.bf16.mxu0 0
        %1340 = vmatmul.mubr.bf16.gmra.mrb[0].mxu0 %v1305
        %v1341 = vpop.f32.mrb[0].mxu0
        %v1342 = vadd.f32 0.0, %v1341
        %v1343 = vpop.f32.mrb[0].mxu0
        %v1344 = vpop.f32.mrb[0].mxu0
        %v1345 = vpop.f32.mrb[0].mxu0
        %1346 = vdwg.mxu0
        %v1348 = vsel %vm1259, %v1297, 0
        %1350 = vmatprep.subr.bf16.mxu0 0
        %1351 = vmatpush1.bf16.msra.mxu0 %v1301
        %1352 = vmatprep.subr.bf16.mxu0 0
        %1353 = vmatpush1.bf16.msra.mxu0 0
        %1354 = vmatprep.subr.bf16.mxu0 0
        %1355 = vmatpush1.bf16.msra.mxu0 0
        %1356 = vmatprep.subr.bf16.mxu0 0
        %1357 = vmatpush1.bf16.msra.mxu0 0
        %1358 = vmatprep.subr.bf16.mxu0 0
        %1359 = vmatpush1.bf16.msra.mxu0 0
        %1360 = vmatprep.subr.bf16.mxu0 0
        %1361 = vmatpush1.bf16.msra.mxu0 0
        %1362 = vmatprep.subr.bf16.mxu0 0
        %1363 = vmatpush1.bf16.msra.mxu0 0
        %1364 = vmatprep.subr.bf16.mxu0 0
        %1365 = vmatpush1.bf16.msra.mxu0 0
        %1366 = vmatprep.subr.bf16.mxu0 0
        %1367 = vmatpush1.bf16.msra.mxu0 0
        %1368 = vmatprep.subr.bf16.mxu0 0
        %1369 = vmatpush1.bf16.msra.mxu0 0
        %1370 = vmatprep.subr.bf16.mxu0 0
        %1371 = vmatpush1.bf16.msra.mxu0 0
        %1372 = vmatprep.subr.bf16.mxu0 0
        %1373 = vmatpush1.bf16.msra.mxu0 0
        %1374 = vmatprep.subr.bf16.mxu0 0
        %1375 = vmatpush1.bf16.msra.mxu0 0
        %1376 = vmatprep.subr.bf16.mxu0 0
        %1377 = vmatpush1.bf16.msra.mxu0 0
        %1378 = vmatprep.subr.bf16.mxu0 0
        %1379 = vmatpush1.bf16.msra.mxu0 0
        %1380 = vmatprep.subr.bf16.mxu0 0
        %1381 = vmatpush1.bf16.msra.mxu0 0
        %1382 = vmatprep.mubr.bf16.mxu0 0
        %1383 = vmatmul.mubr.bf16.gmra.mrb[0].mxu0 %v1348
        %v1384 = vpop.f32.mrb[0].mxu0
        %v1385 = vadd.f32 0.0, %v1384
        %v1386 = vpop.f32.mrb[0].mxu0
        %v1387 = vpop.f32.mrb[0].mxu0
        %v1388 = vpop.f32.mrb[0].mxu0
        %1389 = vdwg.mxu0
        %v1391 = vsel %vm1259, %v1298, 0
        %1393 = vmatprep.subr.bf16.mxu0 0
        %1394 = vmatpush1.bf16.msra.mxu0 %v1302
        %1395 = vmatprep.subr.bf16.mxu0 0
        %1396 = vmatpush1.bf16.msra.mxu0 0
        %1397 = vmatprep.subr.bf16.mxu0 0
        %1398 = vmatpush1.bf16.msra.mxu0 0
        %1399 = vmatprep.subr.bf16.mxu0 0
        %1400 = vmatpush1.bf16.msra.mxu0 0
        %1401 = vmatprep.subr.bf16.mxu0 0
        %1402 = vmatpush1.bf16.msra.mxu0 0
        %1403 = vmatprep.subr.bf16.mxu0 0
        %1404 = vmatpush1.bf16.msra.mxu0 0
        %1405 = vmatprep.subr.bf16.mxu0 0
        %1406 = vmatpush1.bf16.msra.mxu0 0
        %1407 = vmatprep.subr.bf16.mxu0 0
        %1408 = vmatpush1.bf16.msra.mxu0 0
        %1409 = vmatprep.subr.bf16.mxu0 0
        %1410 = vmatpush1.bf16.msra.mxu0 0
        %1411 = vmatprep.subr.bf16.mxu0 0
        %1412 = vmatpush1.bf16.msra.mxu0 0
        %1413 = vmatprep.subr.bf16.mxu0 0
        %1414 = vmatpush1.bf16.msra.mxu0 0
        %1415 = vmatprep.subr.bf16.mxu0 0
        %1416 = vmatpush1.bf16.msra.mxu0 0
        %1417 = vmatprep.subr.bf16.mxu0 0
        %1418 = vmatpush1.bf16.msra.mxu0 0
        %1419 = vmatprep.subr.bf16.mxu0 0
        %1420 = vmatpush1.bf16.msra.mxu0 0
        %1421 = vmatprep.subr.bf16.mxu0 0
        %1422 = vmatpush1.bf16.msra.mxu0 0
        %1423 = vmatprep.subr.bf16.mxu0 0
        %1424 = vmatpush1.bf16.msra.mxu0 0
        %1425 = vmatprep.mubr.bf16.mxu0 0
        %1426 = vmatmul.mubr.bf16.gmra.mrb[0].mxu0 %v1391
        %v1427 = vpop.f32.mrb[0].mxu0
        %v1428 = vadd.f32 0.0, %v1427
        %v1429 = vpop.f32.mrb[0].mxu0
        %v1430 = vpop.f32.mrb[0].mxu0
        %v1431 = vpop.f32.mrb[0].mxu0
        %1432 = vdwg.mxu0
        %v1434 = vsel %vm1259, %v1299, 0
        %1436 = vmatprep.subr.bf16.mxu0 0
        %1437 = vmatpush1.bf16.msra.mxu0 %v1303
        %1438 = vmatprep.subr.bf16.mxu0 0
        %1439 = vmatpush1.bf16.msra.mxu0 0
        %1440 = vmatprep.subr.bf16.mxu0 0
        %1441 = vmatpush1.bf16.msra.mxu0 0
        %1442 = vmatprep.subr.bf16.mxu0 0
        %1443 = vmatpush1.bf16.msra.mxu0 0
        %1444 = vmatprep.subr.bf16.mxu0 0
        %1445 = vmatpush1.bf16.msra.mxu0 0
        %1446 = vmatprep.subr.bf16.mxu0 0
        %1447 = vmatpush1.bf16.msra.mxu0 0
        %1448 = vmatprep.subr.bf16.mxu0 0
        %1449 = vmatpush1.bf16.msra.mxu0 0
        %1450 = vmatprep.subr.bf16.mxu0 0
        %1451 = vmatpush1.bf16.msra.mxu0 0
        %1452 = vmatprep.subr.bf16.mxu0 0
        %1453 = vmatpush1.bf16.msra.mxu0 0
        %1454 = vmatprep.subr.bf16.mxu0 0
        %1455 = vmatpush1.bf16.msra.mxu0 0
        %1456 = vmatprep.subr.bf16.mxu0 0
        %1457 = vmatpush1.bf16.msra.mxu0 0
        %1458 = vmatprep.subr.bf16.mxu0 0
        %1459 = vmatpush1.bf16.msra.mxu0 0
        %1460 = vmatprep.subr.bf16.mxu0 0
        %1461 = vmatpush1.bf16.msra.mxu0 0
        %1462 = vmatprep.subr.bf16.mxu0 0
        %1463 = vmatpush1.bf16.msra.mxu0 0
        %1464 = vmatprep.subr.bf16.mxu0 0
        %1465 = vmatpush1.bf16.msra.mxu0 0
        %1466 = vmatprep.subr.bf16.mxu0 0
        %1467 = vmatpush1.bf16.msra.mxu0 0
        %1468 = vmatprep.mubr.bf16.mxu0 0
        %1469 = vmatmul.mubr.bf16.gmra.mrb[0].mxu0 %v1434
        %v1470 = vpop.f32.mrb[0].mxu0
        %v1471 = vadd.f32 0.0, %v1470
        %v1472 = vpop.f32.mrb[0].mxu0
        %v1473 = vpop.f32.mrb[0].mxu0
        %v1474 = vpop.f32.mrb[0].mxu0
        %1475 = vdwg.mxu0
        %v1476 = vrcp.pop %v1286
        %v1477 = vrcp.pop %v1289
        %v1478 = vrcp.pop %v1292
        %v1479 = vrcp.pop %v1295
        %v1480 = vmul.f32 %v1342, %v1476
        %v1481 = vmul.f32 %v1385, %v1477
        %v1482 = vmul.f32 %v1428, %v1478
        %v1483 = vmul.f32 %v1471, %v1479
        %1485 = vrot.lane.b32.xlu0 %v1481, 8
        %v1486 = vpop.permute.xlu0 %1485
        %1489 = vrot.lane.b32.xlu0 %v1482, 16
        %v1490 = vpop.permute.xlu0 %1489
        %1493 = vrot.lane.b32.xlu0 %v1483, 24
        %v1494 = vpop.permute.xlu0 %1493
        %v1496 = vsel %vm1055, %v1480, %v1486
        %v1497 = vsel %vm1259, %v1496, %v1490
        %vm1498 = vcmask 195584
        %v1499 = vsel %vm1498, %v1497, %v1494
        %v1500 = vpack.c.bf16 %v1499, %v1499
        %v1501 = vld [vmem:[#allocation9] sm:$0xf]
        %v1502 = vld [vmem:[#allocation9 + $0x4] sm:$0xf]
        %v1503 = vld [vmem:[#allocation9 + $0x8] sm:$0xf]
        %v1504 = vld [vmem:[#allocation9 + $0xc] sm:$0xf]
        %v1505 = vld [vmem:[%s6] sm:$0x1]
        %v1507 = vlaneseq
        %v1508 = vshrl.u32 %v1507, 7
        %v1509 = vsub.s32 0, %v1508
        %v1510 = vrot.slane %v1505, %v1509
        %v1516 = vunpack.c.l.b16 %v1501
        %v1517 = vunpack.c.l.b16 %v1502
        %v1518 = vunpack.c.l.b16 %v1503
        %v1519 = vunpack.c.l.b16 %v1504
        %v1520 = vpack.c.b16 %v1517, %v1516
        %v1521 = vpack.c.b16 %v1519, %v1518
        %v1525 = vsel %vm948, %v1500, 0
        %1527 = vmatprep.subr.bf16.mxu0 0
        %1528 = vmatpush1.bf16.msra.mxu0 %v1520
        %1529 = vmatprep.subr.bf16.mxu0 0
        %1530 = vmatpush1.bf16.msra.mxu0 %v1521
        %1531 = vmatprep.subr.bf16.mxu0 0
        %1532 = vmatpush1.bf16.msra.mxu0 0
        %1533 = vmatprep.subr.bf16.mxu0 0
        %1534 = vmatpush1.bf16.msra.mxu0 0
        %1535 = vmatprep.subr.bf16.mxu0 0
        %1536 = vmatpush1.bf16.msra.mxu0 0
        %1537 = vmatprep.subr.bf16.mxu0 0
        %1538 = vmatpush1.bf16.msra.mxu0 0
        %1539 = vmatprep.subr.bf16.mxu0 0
        %1540 = vmatpush1.bf16.msra.mxu0 0
        %1541 = vmatprep.subr.bf16.mxu0 0
        %1542 = vmatpush1.bf16.msra.mxu0 0
        %1543 = vmatprep.subr.bf16.mxu0 0
        %1544 = vmatpush1.bf16.msra.mxu0 0
        %1545 = vmatprep.subr.bf16.mxu0 0
        %1546 = vmatpush1.bf16.msra.mxu0 0
        %1547 = vmatprep.subr.bf16.mxu0 0
        %1548 = vmatpush1.bf16.msra.mxu0 0
        %1549 = vmatprep.subr.bf16.mxu0 0
        %1550 = vmatpush1.bf16.msra.mxu0 0
        %1551 = vmatprep.subr.bf16.mxu0 0
        %1552 = vmatpush1.bf16.msra.mxu0 0
        %1553 = vmatprep.subr.bf16.mxu0 0
        %1554 = vmatpush1.bf16.msra.mxu0 0
        %1555 = vmatprep.subr.bf16.mxu0 0
        %1556 = vmatpush1.bf16.msra.mxu0 0
        %1557 = vmatprep.subr.bf16.mxu0 0
        %1558 = vmatpush1.bf16.msra.mxu0 0
        %1559 = vmatprep.mubr.bf16.mxu0 0
        %1560 = vmatmul.mubr.bf16.gmra.mrb[0].mxu0 %v1525
        %v1561 = vpop.f32.mrb[0].mxu0
        %v1562 = vadd.f32 %v1510, %v1561
        %v1563 = vpop.f32.mrb[0].mxu0
        %v1564 = vpop.f32.mrb[0].mxu0
        %v1565 = vpop.f32.mrb[0].mxu0
        %1566 = vdwg.mxu0
        %v1567 = vadd.f32 %v947, %v1562
        %v1568 = vld [vmem:[%s13] sm:$0x1]
        %v1569 = vld [vmem:[%s14] sm:$0x1]
        %v1570 = vsel %vm948, %v1567, 0.0
        %1571 = vadd.xlane.f32.xlu0 %v1570
        %v1572 = vpop.xlane.xlu0 %1571
        %v1573 = vmul.f32 %v1572, %v952
        %v1574 = vsub.f32 %v1567, %v1573
        %v1575 = vmul.f32 %v1574, %v1574
        %v1576 = vsel %vm948, %v1575, 0.0
        %1577 = vadd.xlane.f32.xlu0 %v1576
        %v1578 = vpop.xlane.xlu0 %1577
        %v1579 = vmul.f32 %v1578, %v952
        %v1580 = vadd.f32 %v1579, 1e-05
        %v1581 = vrsqrt.pop %v1580
        %v1582 = vmul.f32 %v1574, %v1581
        %v1584 = vlaneseq
        %v1585 = vshrl.u32 %v1584, 7
        %v1586 = vsub.s32 0, %v1585
        %v1587 = vrot.slane %v1568, %v1586
        %v1589 = vmul.f32 %v1582, %v1587
        %v1591 = vlaneseq
        %v1592 = vshrl.u32 %v1591, 7
        %v1593 = vsub.s32 0, %v1592
        %v1594 = vrot.slane %v1569, %v1593
        %v1596 = vadd.f32 %v1589, %v1594
        %v1597 = vpack.c.bf16 %v1596, %v1596
        %v1598 = vld [vmem:[#allocation10] sm:$0xf]
        %v1599 = vld [vmem:[#allocation10 + $0x4] sm:$0xf]
        %v1600 = vld [vmem:[#allocation10 + $0x8] sm:$0xf]
        %v1601 = vld [vmem:[#allocation10 + $0xc] sm:$0xf]
        %v1602 = vld [vmem:[%s8] sm:$0x1]
        %v1604 = vlaneseq
        %v1605 = vshrl.u32 %v1604, 7
        %v1606 = vsub.s32 0, %v1605
        %v1607 = vrot.slane %v1602, %v1606
        %v1613 = vunpack.c.l.b16 %v1598
        %v1614 = vunpack.c.l.b16 %v1599
        %v1615 = vunpack.c.l.b16 %v1600
        %v1616 = vunpack.c.l.b16 %v1601
        %v1617 = vpack.c.b16 %v1614, %v1613
        %v1618 = vpack.c.b16 %v1616, %v1615
        %v1622 = vsel %vm948, %v1597, 0
        %1624 = vmatprep.subr.bf16.mxu0 0
        %1625 = vmatpush1.bf16.msra.mxu0 %v1617
        %1626 = vmatprep.subr.bf16.mxu0 0
        %1627 = vmatpush1.bf16.msra.mxu0 %v1618
        %1628 = vmatprep.subr.bf16.mxu0 0
        %1629 = vmatpush1.bf16.msra.mxu0 0
        %1630 = vmatprep.subr.bf16.mxu0 0
        %1631 = vmatpush1.bf16.msra.mxu0 0
        %1632 = vmatprep.subr.bf16.mxu0 0
        %1633 = vmatpush1.bf16.msra.mxu0 0
        %1634 = vmatprep.subr.bf16.mxu0 0
        %1635 = vmatpush1.bf16.msra.mxu0 0
        %1636 = vmatprep.subr.bf16.mxu0 0
        %1637 = vmatpush1.bf16.msra.mxu0 0
        %1638 = vmatprep.subr.bf16.mxu0 0
        %1639 = vmatpush1.bf16.msra.mxu0 0
        %1640 = vmatprep.subr.bf16.mxu0 0
        %1641 = vmatpush1.bf16.msra.mxu0 0
        %1642 = vmatprep.subr.bf16.mxu0 0
        %1643 = vmatpush1.bf16.msra.mxu0 0
        %1644 = vmatprep.subr.bf16.mxu0 0
        %1645 = vmatpush1.bf16.msra.mxu0 0
        %1646 = vmatprep.subr.bf16.mxu0 0
        %1647 = vmatpush1.bf16.msra.mxu0 0
        %1648 = vmatprep.subr.bf16.mxu0 0
        %1649 = vmatpush1.bf16.msra.mxu0 0
        %1650 = vmatprep.subr.bf16.mxu0 0
        %1651 = vmatpush1.bf16.msra.mxu0 0
        %1652 = vmatprep.subr.bf16.mxu0 0
        %1653 = vmatpush1.bf16.msra.mxu0 0
        %1654 = vmatprep.subr.bf16.mxu0 0
        %1655 = vmatpush1.bf16.msra.mxu0 0
        %1656 = vmatprep.mubr.bf16.mxu0 0
        %1657 = vmatmul.mubr.bf16.gmra.mrb[0].mxu0 %v1622
        %v1658 = vpop.f32.mrb[0].mxu0
        %v1659 = vadd.f32 %v1607, %v1658
        %v1660 = vpop.f32.mrb[0].mxu0
        %v1661 = vpop.f32.mrb[0].mxu0
        %v1662 = vpop.f32.mrb[0].mxu0
        %1663 = vdwg.mxu0
        %v1664 = vmax.f32 %v1659, 0.0
        %v1665 = vpack.c.bf16 %v1664, %v1664
        %v1666 = vld [vmem:[%s9] sm:$0xf]
        %v1667 = vld [vmem:[%s9 + $0x4] sm:$0xf]
        %v1668 = vld [vmem:[%s9 + $0x8] sm:$0xf]
        %v1669 = vld [vmem:[%s9 + $0xc] sm:$0xf]
        %v1670 = vld [vmem:[%s9 + $0x10] sm:$0xf]
        %v1671 = vld [vmem:[%s9 + $0x14] sm:$0xf]
        %v1672 = vld [vmem:[%s9 + $0x18] sm:$0xf]
        %v1673 = vld [vmem:[%s9 + $0x1c] sm:$0xf]
        %v1674 = vld [vmem:[%s9 + $0x20] sm:$0xf]
        %v1675 = vld [vmem:[%s9 + $0x24] sm:$0xf]
        %v1676 = vld [vmem:[%s9 + $0x28] sm:$0xf]
        %v1677 = vld [vmem:[%s9 + $0x2c] sm:$0xf]
        %v1678 = vld [vmem:[%s9 + $0x30] sm:$0xf]
        %v1679 = vld [vmem:[%s9 + $0x34] sm:$0xf]
        %v1680 = vld [vmem:[%s9 + $0x38] sm:$0xf]
        %v1681 = vld [vmem:[%s9 + $0x3c] sm:$0xf]
        %v1682 = vld [vmem:[%s10] sm:$0x1]
        %v1684 = vlaneseq
        %v1685 = vshrl.u32 %v1684, 7
        %v1686 = vsub.s32 0, %v1685
        %v1687 = vrot.slane %v1682, %v1686
        %v1705 = vunpack.c.l.b16 %v1666
        %v1706 = vunpack.c.l.b16 %v1667
        %v1707 = vunpack.c.l.b16 %v1668
        %v1708 = vunpack.c.l.b16 %v1669
        %v1709 = vunpack.c.l.b16 %v1670
        %v1710 = vunpack.c.l.b16 %v1671
        %v1711 = vunpack.c.l.b16 %v1672
        %v1712 = vunpack.c.l.b16 %v1673
        %v1713 = vunpack.c.l.b16 %v1674
        %v1714 = vunpack.c.l.b16 %v1675
        %v1715 = vunpack.c.l.b16 %v1676
        %v1716 = vunpack.c.l.b16 %v1677
        %v1717 = vunpack.c.l.b16 %v1678
        %v1718 = vunpack.c.l.b16 %v1679
        %v1719 = vunpack.c.l.b16 %v1680
        %v1720 = vunpack.c.l.b16 %v1681
        %v1721 = vpack.c.b16 %v1706, %v1705
        %v1722 = vpack.c.b16 %v1708, %v1707
        %v1723 = vpack.c.b16 %v1710, %v1709
        %v1724 = vpack.c.b16 %v1712, %v1711
        %v1725 = vpack.c.b16 %v1714, %v1713
        %v1726 = vpack.c.b16 %v1716, %v1715
        %v1727 = vpack.c.b16 %v1718, %v1717
        %v1728 = vpack.c.b16 %v1720, %v1719
        %1737 = vmatprep.subr.bf16.mxu0 0
        %1738 = vmatpush1.bf16.msra.mxu0 %v1721
        %1739 = vmatprep.subr.bf16.mxu0 0
        %1740 = vmatpush1.bf16.msra.mxu0 %v1722
        %1741 = vmatprep.subr.bf16.mxu0 0
        %1742 = vmatpush1.bf16.msra.mxu0 %v1723
        %1743 = vmatprep.subr.bf16.mxu0 0
        %1744 = vmatpush1.bf16.msra.mxu0 %v1724
        %1745 = vmatprep.subr.bf16.mxu0 0
        %1746 = vmatpush1.bf16.msra.mxu0 %v1725
        %1747 = vmatprep.subr.bf16.mxu0 0
        %1748 = vmatpush1.bf16.msra.mxu0 %v1726
        %1749 = vmatprep.subr.bf16.mxu0 0
        %1750 = vmatpush1.bf16.msra.mxu0 %v1727
        %1751 = vmatprep.subr.bf16.mxu0 0
        %1752 = vmatpush1.bf16.msra.mxu0 %v1728
        %1753 = vmatprep.subr.bf16.mxu0 0
        %1754 = vmatpush1.bf16.msra.mxu0 0
        %1755 = vmatprep.subr.bf16.mxu0 0
        %1756 = vmatpush1.bf16.msra.mxu0 0
        %1757 = vmatprep.subr.bf16.mxu0 0
        %1758 = vmatpush1.bf16.msra.mxu0 0
        %1759 = vmatprep.subr.bf16.mxu0 0
        %1760 = vmatpush1.bf16.msra.mxu0 0
        %1761 = vmatprep.subr.bf16.mxu0 0
        %1762 = vmatpush1.bf16.msra.mxu0 0
        %1763 = vmatprep.subr.bf16.mxu0 0
        %1764 = vmatpush1.bf16.msra.mxu0 0
        %1765 = vmatprep.subr.bf16.mxu0 0
        %1766 = vmatpush1.bf16.msra.mxu0 0
        %1767 = vmatprep.subr.bf16.mxu0 0
        %1768 = vmatpush1.bf16.msra.mxu0 0
        %1769 = vmatprep.mubr.bf16.mxu0 0
        %1770 = vmatmul.mubr.bf16.gmra.mrb[0].mxu0 %v1665
        %v1771 = vpop.f32.mrb[0].mxu0
        %v1772 = vadd.f32 %v1687, %v1771
        %v1773 = vpop.f32.mrb[0].mxu0
        %v1774 = vpop.f32.mrb[0].mxu0
        %v1775 = vpop.f32.mrb[0].mxu0
        %1776 = vdwg.mxu0
        %v1777 = vadd.f32 %v1567, %v1772
        %1778 = vst.msk [vmem:[%s583] sm:$0xff] %vm948, %v1777
        %s1779 = sand.u32 %s381, 1
        %s1780 = scalar_lea.sflag [#allocation6], %s1779
        %s1781 = sand.u32 %s381, 1
        %s1782 = smul.addr %s1781, 8
        %s1783 = scalar_lea.vmem [#allocation12], %s1782
        // Predicated region
        $region101: #{tpu_custom_call.1} parent=79 // pred_check
          %p1784 = pneg %p391
        $region102: #{tpu_custom_call.1} parent=79 // pred_check_branch
          %1786 = sbr.rel (%p1784) target = $region104
        $region103: #{tpu_custom_call.1} parent=79 // pred_region
          %s1788 = ssub.s32 128, 128
          %1789 = vsyncadd %s1780, %s1788
          %s1790 = smul.addr %s36, 2
          %s1791 = sadd.s32 %s37, %s1790
          %s1792 = smul.addr %s1791, 128
          %s1793 = scalar_lea.hbm %s15, %s1792
          %s1795 = sshll.u32 %s1783, 4
          %s1796 = int_to_ptr.vmem [resolvable:$true] %s1795
          %1798 = dma.vmem_to_hbm [thread:$0]  %s1796, 128, %s1793, %s1780
        $region104: #{tpu_custom_call.1} parent=79 // pred_fallthru
          _
      $region80: #{tpu_custom_call.1} parent=5 // pred_fallthru
        _
      %p1799 = scmp.le.s32.totalorder 2, %s27
      // Predicated region
      $region105: #{tpu_custom_call.1} parent=5 // pred_check
        %p1800 = pneg %p1799
      $region106: #{tpu_custom_call.1} parent=5 // pred_check_branch
        %1802 = sbr.rel (%p1800) target = $region108
      $region107: #{tpu_custom_call.1} parent=5 // pred_region
        %s1803 = ssub.s32 %s27, 2
        // Predicated region
        $region109: #{tpu_custom_call.1} parent=107 // pred_check
          %p1804 = pneg %p397
        $region110: #{tpu_custom_call.1} parent=107 // pred_check_branch
          %1806 = sbr.rel (%p1804) target = $region112
        $region111: #{tpu_custom_call.1} parent=107 // pred_region
          %s1807 = sand.u32 %s382, 1
          %s1808 = scalar_lea.sflag [#allocation6], %s1807
          %s1809 = sand.u32 %s382, 1
          %s1810 = smul.addr %s1809, 8
          %s1811 = scalar_lea.vmem [#allocation12], %s1810
          %1812 = dma.done %s1808, 128
        $region112: #{tpu_custom_call.1} parent=107 // pred_fallthru
          _
      $region108: #{tpu_custom_call.1} parent=5 // pred_fallthru
        _
    $region6: #{tpu_custom_call.1} parent=1 // loop_footer
      %s31 = sadd.s32 1, %s27
    $region7: #{tpu_custom_call.1} parent=1 // loop_footer_branch
      %26 = sbr.rel target = $region3
    $region8: #{tpu_custom_call.1} parent=1 // loop_exit
      _
    %1813 = vsyncpa [#allocation5], 1
    %s1814 = scalar_lea.sflag [#allocation5], 1
    %1815 = vsyncpa %s1814, 1
    %1816 = vsyncpa [#allocation8], 1
    %1817 = vsyncpa [#allocation11], 1
    %1818 = vsyncpa [#allocation6], 1
    %s1819 = scalar_lea.sflag [#allocation6], 1
    %1820 = vsyncpa %s1819, 1

</llo_original>
